<compile_context>
chip_gen: v7x
topology: tpu7x:2x2x1
jax: 0.10.0
libtpu: 0.0.40
codegen_flags: <defaults>
</compile_context>

<pallas_src>
import jax
import jax.numpy as jnp
import numpy as np
from jax.experimental import pallas as pl
from jax.experimental.pallas import tpu as pltpu


def _round_up(x, m):
    return ((x + m - 1) // m) * m


def _charlstm_kernel(x_ref, h0_ref, c0_ref,
                     wx_ref, bx_ref, whh_ref,
                     wfc_ref, bfc_ref,
                     out_ref, hN_ref, cN_ref,
                     gx_scr, hslab_scr):
    B, HP = h0_ref.shape
    T = x_ref.shape[0] // B

    # ---- time-parallel phase 1: gate input projection for all T steps at once ----
    # (T*B, In) @ (In, 4*HP) + b_x  -> (T*B, 4*HP); bias broadcast happens exactly once.
    gx_scr[...] = (jnp.dot(x_ref[...], wx_ref[...],
                           preferred_element_type=jnp.float32) + bx_ref[...])

    whh = whh_ref[...]          # (HP, 4*HP); rows >= H are zero, so padded lanes of h are inert
    h = h0_ref[...]             # (B, HP)
    c = c0_ref[...]             # (B, HP)

    # ---- sequential recurrence: fully unrolled, only h @ W_hh on the critical path ----
    for t in range(T):
        gates = (gx_scr[t * B:(t + 1) * B, :]
                 + jnp.dot(h, whh, preferred_element_type=jnp.float32))   # (B, 4*HP)
        # Each gate occupies its own 128-lane-aligned block -> no mid-lane slicing.
        i_g = jax.nn.sigmoid(gates[:, 0:HP])
        f_g = jax.nn.sigmoid(gates[:, HP:2 * HP])
        g_g = jnp.tanh(gates[:, 2 * HP:3 * HP])
        o_g = jax.nn.sigmoid(gates[:, 3 * HP:4 * HP])
        c = f_g * c + i_g * g_g
        h = o_g * jnp.tanh(c)
        hslab_scr[t * B:(t + 1) * B, :] = h

    hN_ref[...] = h
    cN_ref[...] = c

    # ---- time-parallel phase 2: one lane-dense fc matmul + one contiguous store ----
    out_ref[...] = (jnp.dot(hslab_scr[...], wfc_ref[...],
                            preferred_element_type=jnp.float32) + bfc_ref[...])


def charlstm_forward(x, hidden, params):
    """x: (B, T, input_size) float32; hidden: (h0, c0) each (1, B, H).
    Returns (output (B, T, output_size), (h_n, c_n) each (1, B, H))."""
    h0, c0 = hidden
    B, T, In = x.shape
    H = params["w_emb_t"].shape[1]
    Out = params["w_fc_t"].shape[1]

    HP = _round_up(H, 128)       # per-gate lane-aligned width
    OutP = _round_up(Out, 128)   # lane-dense output width

    # --- fold embedding + all biases into the gate input projection (exact) ---
    w_ih = params["w_ih_t"]                                        # (H, 4H)
    w_x = params["w_emb_t"] @ w_ih                                 # (In, 4H)
    b_x = params["b_emb"] @ w_ih + params["b_ih"] + params["b_hh"] # (1, 4H)

    def pad_gate_cols(a):
        # (..., 4H) -> (..., 4*HP): each gate block padded to its own 128-lane slab.
        pads = [(0, 0)] * (a.ndim - 1) + [(0, HP - H)]
        parts = [jnp.pad(a[..., k * H:(k + 1) * H], pads) for k in range(4)]
        return jnp.concatenate(parts, axis=-1)

    w_x_p = pad_gate_cols(w_x).astype(jnp.float32)                               # (In, 4*HP)
    b_x_p = pad_gate_cols(b_x).astype(jnp.float32)                               # (1, 4*HP)
    w_hh_p = pad_gate_cols(jnp.pad(params["w_hh_t"], ((0, HP - H), (0, 0)))
                           ).astype(jnp.float32)                                 # (HP, 4*HP)
    w_fc_p = jnp.pad(params["w_fc_t"], ((0, HP - H), (0, OutP - Out))
                     ).astype(jnp.float32)                                       # (HP, OutP)
    b_fc_p = jnp.pad(params["b_fc"], ((0, 0), (0, OutP - Out))).astype(jnp.float32)  # (1, OutP)

    h0_p = jnp.pad(h0[0].astype(jnp.float32), ((0, 0), (0, HP - H)))             # (B, HP)
    c0_p = jnp.pad(c0[0].astype(jnp.float32), ((0, 0), (0, HP - H)))             # (B, HP)

    # time-major flattened input: row index = t*B + b
    x_tm = jnp.transpose(x, (1, 0, 2)).reshape(T * B, In).astype(jnp.float32)    # (T*B, In)

    full2d = lambda i: (0, 0)

    out_p, hN_p, cN_p = pl.pallas_call(
        _charlstm_kernel,
        out_shape=(
            jax.ShapeDtypeStruct((T * B, OutP), jnp.float32),
            jax.ShapeDtypeStruct((B, HP), jnp.float32),
            jax.ShapeDtypeStruct((B, HP), jnp.float32),
        ),
        grid_spec=pltpu.PrefetchScalarGridSpec(
            num_scalar_prefetch=0,
            grid=(1,),
            in_specs=[
                pl.BlockSpec((T * B, In), full2d),      # x (time-major, flattened)
                pl.BlockSpec((B, HP), full2d),          # h0 (padded)
                pl.BlockSpec((B, HP), full2d),          # c0 (padded)
                pl.BlockSpec((In, 4 * HP), full2d),     # W_x = W_emb^T @ W_ih^T (gate-padded)
                pl.BlockSpec((1, 4 * HP), full2d),      # b_x = b_emb@W_ih^T + b_ih + b_hh
                pl.BlockSpec((HP, 4 * HP), full2d),     # W_hh^T (row- and gate-padded)
                pl.BlockSpec((HP, OutP), full2d),       # W_fc^T (padded)
                pl.BlockSpec((1, OutP), full2d),        # b_fc (padded)
            ],
            out_specs=[
                pl.BlockSpec((T * B, OutP), full2d),    # full lane-dense output slab
                pl.BlockSpec((B, HP), full2d),          # h_n (padded)
                pl.BlockSpec((B, HP), full2d),          # c_n (padded)
            ],
            scratch_shapes=[
                pltpu.VMEM((T * B, 4 * HP), jnp.float32),   # gates_x for all steps
                pltpu.VMEM((T * B, HP), jnp.float32),       # stacked hidden outputs
            ],
        ),
        compiler_params=pltpu.CompilerParams(
            dimension_semantics=("arbitrary",)),
    )(x_tm, h0_p, c0_p, w_x_p, b_x_p, w_hh_p, w_fc_p, b_fc_p)

    # strip padding, restore batch_first layout
    output = out_p[:, :Out].reshape(T, B, Out).transpose(1, 0, 2)   # (B, T, Out)
    h_n = hN_p[:, :H][None]
    c_n = cN_p[:, :H][None]
    return output, (h_n, c_n)


def charlstm_reference(x, hidden, params):
    """Pure-JAX reference implementing the same PyTorch semantics."""
    h0, c0 = hidden
    H = params["w_emb_t"].shape[1]
    emb = x @ params["w_emb_t"] + params["b_emb"]                # (B, T, H)

    def step(carry, x_t):
        h, c = carry
        gates = (x_t @ params["w_ih_t"] + params["b_ih"][0]
                 + h @ params["w_hh_t"] + params["b_hh"][0])
        i_g = jax.nn.sigmoid(gates[:, 0:H])
        f_g = jax.nn.sigmoid(gates[:, H:2 * H])
        g_g = jnp.tanh(gates[:, 2 * H:3 * H])
        o_g = jax.nn.sigmoid(gates[:, 3 * H:4 * H])
        c = f_g * c + i_g * g_g
        h = o_g * jnp.tanh(c)
        return (h, c), h

    (h_n, c_n), hs = jax.lax.scan(step, (h0[0], c0[0]), jnp.transpose(emb, (1, 0, 2)))
    hs = jnp.transpose(hs, (1, 0, 2))                            # (B, T, H)
    out = hs @ params["w_fc_t"] + params["b_fc"]
    return out, (h_n[None], c_n[None])


def make_params(key, input_size, hidden_size, output_size):
    ks = jax.random.split(key, 8)
    s = 0.1
    return {
        "w_emb_t": s * jax.random.normal(ks[0], (input_size, hidden_size), jnp.float32),
        "b_emb":   s * jax.random.normal(ks[1], (1, hidden_size), jnp.float32),
        "w_ih_t":  s * jax.random.normal(ks[2], (hidden_size, 4 * hidden_size), jnp.float32),
        "b_ih":    s * jax.random.normal(ks[3], (1, 4 * hidden_size), jnp.float32),
        "w_hh_t":  s * jax.random.normal(ks[4], (hidden_size, 4 * hidden_size), jnp.float32),
        "b_hh":    s * jax.random.normal(ks[5], (1, 4 * hidden_size), jnp.float32),
        "w_fc_t":  s * jax.random.normal(ks[6], (hidden_size, output_size), jnp.float32),
        "b_fc":    s * jax.random.normal(ks[7], (1, output_size), jnp.float32),
    }


if __name__ == "__main__":
    B, T = 2, 8
    input_size, hidden_size, output_size, num_layers = 16, 32, 16, 1

    key = jax.random.PRNGKey(0)
    kx, kp = jax.random.split(key)
    x = jax.random.normal(kx, (B, T, input_size), jnp.float32)
    params = make_params(kp, input_size, hidden_size, output_size)

    # init_hidden equivalent
    h0 = jnp.zeros((num_layers, B, hidden_size), jnp.float32)
    c0 = jnp.zeros((num_layers, B, hidden_size), jnp.float32)

    out, (h_n, c_n) = charlstm_forward(x, (h0, c0), params)
    out = jax.block_until_ready(out)
    h_n = jax.block_until_ready(h_n)
    c_n = jax.block_until_ready(c_n)

    out_ref, (h_ref, c_ref) = charlstm_reference(x, (h0, c0), params)
    np.testing.assert_allclose(np.asarray(out), np.asarray(out_ref), rtol=1e-4, atol=1e-5)
    np.testing.assert_allclose(np.asarray(h_n), np.asarray(h_ref), rtol=1e-4, atol=1e-5)
    np.testing.assert_allclose(np.asarray(c_n), np.asarray(c_ref), rtol=1e-4, atol=1e-5)

    print("KERNEL_OK")
</pallas_src>

<mosaic_0001>
module attributes {stable_mosaic.version = 11 : i64} {
  func.func @_charlstm_kernel(%arg0: i32, %arg1: memref<16x16xf32, #tpu.memory_space<vmem>>, %arg2: memref<2x128xf32, #tpu.memory_space<vmem>>, %arg3: memref<2x128xf32, #tpu.memory_space<vmem>>, %arg4: memref<16x512xf32, #tpu.memory_space<vmem>>, %arg5: memref<1x512xf32, #tpu.memory_space<vmem>>, %arg6: memref<128x512xf32, #tpu.memory_space<vmem>>, %arg7: memref<128x128xf32, #tpu.memory_space<vmem>>, %arg8: memref<1x128xf32, #tpu.memory_space<vmem>>, %arg9: memref<16x128xf32, #tpu.memory_space<vmem>>, %arg10: memref<2x128xf32, #tpu.memory_space<vmem>>, %arg11: memref<2x128xf32, #tpu.memory_space<vmem>>, %arg12: memref<16x512xf32, #tpu.memory_space<vmem>>, %arg13: memref<16x128xf32, #tpu.memory_space<vmem>>) attributes {dimension_semantics = [#tpu.dimension_semantics<arbitrary>], iteration_bounds = array<i64: 1>, scalar_prefetch = 0 : i64, scratch_operands = 2 : i64, tpu.core_type = #tpu.core_type<tc>, window_params = [{pipeline_mode = #tpu.pipeline_mode<synchronous>, transform_indices = @transform_0, window_bounds = array<i64: 16, 16>}, {pipeline_mode = #tpu.pipeline_mode<synchronous>, transform_indices = @transform_1, window_bounds = array<i64: 2, 128>}, {pipeline_mode = #tpu.pipeline_mode<synchronous>, transform_indices = @transform_2, window_bounds = array<i64: 2, 128>}, {pipeline_mode = #tpu.pipeline_mode<synchronous>, transform_indices = @transform_3, window_bounds = array<i64: 16, 512>}, {pipeline_mode = #tpu.pipeline_mode<synchronous>, transform_indices = @transform_4, window_bounds = array<i64: 1, 512>}, {pipeline_mode = #tpu.pipeline_mode<synchronous>, transform_indices = @transform_5, window_bounds = array<i64: 128, 512>}, {pipeline_mode = #tpu.pipeline_mode<synchronous>, transform_indices = @transform_6, window_bounds = array<i64: 128, 128>}, {pipeline_mode = #tpu.pipeline_mode<synchronous>, transform_indices = @transform_7, window_bounds = array<i64: 1, 128>}, {pipeline_mode = #tpu.pipeline_mode<synchronous>, transform_indices = @transform_8, window_bounds = array<i64: 16, 128>}, {pipeline_mode = #tpu.pipeline_mode<synchronous>, transform_indices = @transform_9, window_bounds = array<i64: 2, 128>}, {pipeline_mode = #tpu.pipeline_mode<synchronous>, transform_indices = @transform_10, window_bounds = array<i64: 2, 128>}]} {
    %c0 = arith.constant 0 : index
    %c0_0 = arith.constant 0 : index
    %0 = vector.load %arg1[%c0, %c0_0] : memref<16x16xf32, #tpu.memory_space<vmem>>, vector<16x16xf32>
    %c0_1 = arith.constant 0 : index
    %c0_2 = arith.constant 0 : index
    %1 = vector.load %arg4[%c0_1, %c0_2] : memref<16x512xf32, #tpu.memory_space<vmem>>, vector<16x512xf32>
    %cst = arith.constant dense<0.000000e+00> : vector<16x512xf32>
    %2 = tpu.matmul %0, %1, %cst {dimension_numbers = #tpu.dot_dimension_numbers<[1], [0], [0], [1], [0, 0, 1, 1], [], []>} : vector<16x16xf32>, vector<16x512xf32>, vector<16x512xf32> -> vector<16x512xf32>
    %c0_3 = arith.constant 0 : index
    %c0_4 = arith.constant 0 : index
    %3 = vector.load %arg5[%c0_3, %c0_4] : memref<1x512xf32, #tpu.memory_space<vmem>>, vector<1x512xf32>
    %4 = vector.broadcast %3 : vector<1x512xf32> to vector<16x512xf32>
    %5 = arith.addf %2, %4 : vector<16x512xf32>
    %c0_5 = arith.constant 0 : index
    %c0_6 = arith.constant 0 : index
    %6 = vector.load %arg12[%c0_5, %c0_6] : memref<16x512xf32, #tpu.memory_space<vmem>>, vector<16x512xf32>
    tpu.vector_store %arg12[%c0_5, %c0_6], %5 {strides = array<i32>} : memref<16x512xf32, #tpu.memory_space<vmem>>, vector<16x512xf32>,
    %c0_7 = arith.constant 0 : index
    %c0_8 = arith.constant 0 : index
    %7 = vector.load %arg6[%c0_7, %c0_8] : memref<128x512xf32, #tpu.memory_space<vmem>>, vector<128x512xf32>
    %c0_9 = arith.constant 0 : index
    %c0_10 = arith.constant 0 : index
    %8 = vector.load %arg2[%c0_9, %c0_10] : memref<2x128xf32, #tpu.memory_space<vmem>>, vector<2x128xf32>
    %c0_11 = arith.constant 0 : index
    %c0_12 = arith.constant 0 : index
    %9 = vector.load %arg3[%c0_11, %c0_12] : memref<2x128xf32, #tpu.memory_space<vmem>>, vector<2x128xf32>
    %c0_13 = arith.constant 0 : index
    %c0_14 = arith.constant 0 : index
    %10 = vector.load %arg12[%c0_13, %c0_14] : memref<16x512xf32, #tpu.memory_space<vmem>>, vector<2x512xf32>
    %cst_15 = arith.constant dense<0.000000e+00> : vector<2x512xf32>
    %11 = tpu.matmul %8, %7, %cst_15 {dimension_numbers = #tpu.dot_dimension_numbers<[1], [0], [0], [1], [0, 0, 1, 1], [], []>} : vector<2x128xf32>, vector<128x512xf32>, vector<2x512xf32> -> vector<2x512xf32>
    %12 = arith.addf %10, %11 : vector<2x512xf32>
    %13 = vector.extract_strided_slice %12 {offsets = [0, 0], sizes = [2, 128], strides = [1, 1]} : vector<2x512xf32> to vector<2x128xf32>
    %14 = arith.negf %13 : vector<2x128xf32>
    %15 = math.exp %14 : vector<2x128xf32>
    %cst_16 = arith.constant 1.000000e+00 : f32
    %16 = vector.broadcast %cst_16 : f32 to vector<2x128xf32>
    %17 = arith.addf %16, %15 : vector<2x128xf32>
    %18 = arith.divf %16, %17 : vector<2x128xf32>
    %19 = vector.extract_strided_slice %12 {offsets = [0, 128], sizes = [2, 128], strides = [1, 1]} : vector<2x512xf32> to vector<2x128xf32>
    %20 = arith.negf %19 : vector<2x128xf32>
    %21 = math.exp %20 : vector<2x128xf32>
    %cst_17 = arith.constant 1.000000e+00 : f32
    %22 = vector.broadcast %cst_17 : f32 to vector<2x128xf32>
    %23 = arith.addf %22, %21 : vector<2x128xf32>
    %24 = arith.divf %22, %23 : vector<2x128xf32>
    %25 = vector.extract_strided_slice %12 {offsets = [0, 256], sizes = [2, 128], strides = [1, 1]} : vector<2x512xf32> to vector<2x128xf32>
    %26 = math.tanh %25 : vector<2x128xf32>
    %27 = vector.extract_strided_slice %12 {offsets = [0, 384], sizes = [2, 128], strides = [1, 1]} : vector<2x512xf32> to vector<2x128xf32>
    %28 = arith.negf %27 : vector<2x128xf32>
    %29 = math.exp %28 : vector<2x128xf32>
    %cst_18 = arith.constant 1.000000e+00 : f32
    %30 = vector.broadcast %cst_18 : f32 to vector<2x128xf32>
    %31 = arith.addf %30, %29 : vector<2x128xf32>
    %32 = arith.divf %30, %31 : vector<2x128xf32>
    %33 = arith.mulf %24, %9 : vector<2x128xf32>
    %34 = arith.mulf %18, %26 : vector<2x128xf32>
    %35 = arith.addf %33, %34 : vector<2x128xf32>
    %36 = math.tanh %35 : vector<2x128xf32>
    %37 = arith.mulf %32, %36 : vector<2x128xf32>
    %c0_19 = arith.constant 0 : index
    %c0_20 = arith.constant 0 : index
    %38 = vector.load %arg13[%c0_19, %c0_20] : memref<16x128xf32, #tpu.memory_space<vmem>>, vector<2x128xf32>
    tpu.vector_store %arg13[%c0_19, %c0_20], %37 {strides = array<i32>} : memref<16x128xf32, #tpu.memory_space<vmem>>, vector<2x128xf32>,
    %c2 = arith.constant 2 : index
    %c0_21 = arith.constant 0 : index
    %39 = vector.load %arg12[%c2, %c0_21] : memref<16x512xf32, #tpu.memory_space<vmem>>, vector<2x512xf32>
    %cst_22 = arith.constant dense<0.000000e+00> : vector<2x512xf32>
    %40 = tpu.matmul %37, %7, %cst_22 {dimension_numbers = #tpu.dot_dimension_numbers<[1], [0], [0], [1], [0, 0, 1, 1], [], []>} : vector<2x128xf32>, vector<128x512xf32>, vector<2x512xf32> -> vector<2x512xf32>
    %41 = arith.addf %39, %40 : vector<2x512xf32>
    %42 = vector.extract_strided_slice %41 {offsets = [0, 0], sizes = [2, 128], strides = [1, 1]} : vector<2x512xf32> to vector<2x128xf32>
    %43 = arith.negf %42 : vector<2x128xf32>
    %44 = math.exp %43 : vector<2x128xf32>
    %cst_23 = arith.constant 1.000000e+00 : f32
    %45 = vector.broadcast %cst_23 : f32 to vector<2x128xf32>
    %46 = arith.addf %45, %44 : vector<2x128xf32>
    %47 = arith.divf %45, %46 : vector<2x128xf32>
    %48 = vector.extract_strided_slice %41 {offsets = [0, 128], sizes = [2, 128], strides = [1, 1]} : vector<2x512xf32> to vector<2x128xf32>
    %49 = arith.negf %48 : vector<2x128xf32>
    %50 = math.exp %49 : vector<2x128xf32>
    %cst_24 = arith.constant 1.000000e+00 : f32
    %51 = vector.broadcast %cst_24 : f32 to vector<2x128xf32>
    %52 = arith.addf %51, %50 : vector<2x128xf32>
    %53 = arith.divf %51, %52 : vector<2x128xf32>
    %54 = vector.extract_strided_slice %41 {offsets = [0, 256], sizes = [2, 128], strides = [1, 1]} : vector<2x512xf32> to vector<2x128xf32>
    %55 = math.tanh %54 : vector<2x128xf32>
    %56 = vector.extract_strided_slice %41 {offsets = [0, 384], sizes = [2, 128], strides = [1, 1]} : vector<2x512xf32> to vector<2x128xf32>
    %57 = arith.negf %56 : vector<2x128xf32>
    %58 = math.exp %57 : vector<2x128xf32>
    %cst_25 = arith.constant 1.000000e+00 : f32
    %59 = vector.broadcast %cst_25 : f32 to vector<2x128xf32>
    %60 = arith.addf %59, %58 : vector<2x128xf32>
    %61 = arith.divf %59, %60 : vector<2x128xf32>
    %62 = arith.mulf %53, %35 : vector<2x128xf32>
    %63 = arith.mulf %47, %55 : vector<2x128xf32>
    %64 = arith.addf %62, %63 : vector<2x128xf32>
    %65 = math.tanh %64 : vector<2x128xf32>
    %66 = arith.mulf %61, %65 : vector<2x128xf32>
    %c2_26 = arith.constant 2 : index
    %c0_27 = arith.constant 0 : index
    %67 = vector.load %arg13[%c2_26, %c0_27] : memref<16x128xf32, #tpu.memory_space<vmem>>, vector<2x128xf32>
    tpu.vector_store %arg13[%c2_26, %c0_27], %66 {strides = array<i32>} : memref<16x128xf32, #tpu.memory_space<vmem>>, vector<2x128xf32>,
    %c4 = arith.constant 4 : index
    %c0_28 = arith.constant 0 : index
    %68 = vector.load %arg12[%c4, %c0_28] : memref<16x512xf32, #tpu.memory_space<vmem>>, vector<2x512xf32>
    %cst_29 = arith.constant dense<0.000000e+00> : vector<2x512xf32>
    %69 = tpu.matmul %66, %7, %cst_29 {dimension_numbers = #tpu.dot_dimension_numbers<[1], [0], [0], [1], [0, 0, 1, 1], [], []>} : vector<2x128xf32>, vector<128x512xf32>, vector<2x512xf32> -> vector<2x512xf32>
    %70 = arith.addf %68, %69 : vector<2x512xf32>
    %71 = vector.extract_strided_slice %70 {offsets = [0, 0], sizes = [2, 128], strides = [1, 1]} : vector<2x512xf32> to vector<2x128xf32>
    %72 = arith.negf %71 : vector<2x128xf32>
    %73 = math.exp %72 : vector<2x128xf32>
    %cst_30 = arith.constant 1.000000e+00 : f32
    %74 = vector.broadcast %cst_30 : f32 to vector<2x128xf32>
    %75 = arith.addf %74, %73 : vector<2x128xf32>
    %76 = arith.divf %74, %75 : vector<2x128xf32>
    %77 = vector.extract_strided_slice %70 {offsets = [0, 128], sizes = [2, 128], strides = [1, 1]} : vector<2x512xf32> to vector<2x128xf32>
    %78 = arith.negf %77 : vector<2x128xf32>
    %79 = math.exp %78 : vector<2x128xf32>
    %cst_31 = arith.constant 1.000000e+00 : f32
    %80 = vector.broadcast %cst_31 : f32 to vector<2x128xf32>
    %81 = arith.addf %80, %79 : vector<2x128xf32>
    %82 = arith.divf %80, %81 : vector<2x128xf32>
    %83 = vector.extract_strided_slice %70 {offsets = [0, 256], sizes = [2, 128], strides = [1, 1]} : vector<2x512xf32> to vector<2x128xf32>
    %84 = math.tanh %83 : vector<2x128xf32>
    %85 = vector.extract_strided_slice %70 {offsets = [0, 384], sizes = [2, 128], strides = [1, 1]} : vector<2x512xf32> to vector<2x128xf32>
    %86 = arith.negf %85 : vector<2x128xf32>
    %87 = math.exp %86 : vector<2x128xf32>
    %cst_32 = arith.constant 1.000000e+00 : f32
    %88 = vector.broadcast %cst_32 : f32 to vector<2x128xf32>
    %89 = arith.addf %88, %87 : vector<2x128xf32>
    %90 = arith.divf %88, %89 : vector<2x128xf32>
    %91 = arith.mulf %82, %64 : vector<2x128xf32>
    %92 = arith.mulf %76, %84 : vector<2x128xf32>
    %93 = arith.addf %91, %92 : vector<2x128xf32>
    %94 = math.tanh %93 : vector<2x128xf32>
    %95 = arith.mulf %90, %94 : vector<2x128xf32>
    %c4_33 = arith.constant 4 : index
    %c0_34 = arith.constant 0 : index
    %96 = vector.load %arg13[%c4_33, %c0_34] : memref<16x128xf32, #tpu.memory_space<vmem>>, vector<2x128xf32>
    tpu.vector_store %arg13[%c4_33, %c0_34], %95 {strides = array<i32>} : memref<16x128xf32, #tpu.memory_space<vmem>>, vector<2x128xf32>,
    %c6 = arith.constant 6 : index
    %c0_35 = arith.constant 0 : index
    %97 = vector.load %arg12[%c6, %c0_35] : memref<16x512xf32, #tpu.memory_space<vmem>>, vector<2x512xf32>
    %cst_36 = arith.constant dense<0.000000e+00> : vector<2x512xf32>
    %98 = tpu.matmul %95, %7, %cst_36 {dimension_numbers = #tpu.dot_dimension_numbers<[1], [0], [0], [1], [0, 0, 1, 1], [], []>} : vector<2x128xf32>, vector<128x512xf32>, vector<2x512xf32> -> vector<2x512xf32>
    %99 = arith.addf %97, %98 : vector<2x512xf32>
    %100 = vector.extract_strided_slice %99 {offsets = [0, 0], sizes = [2, 128], strides = [1, 1]} : vector<2x512xf32> to vector<2x128xf32>
    %101 = arith.negf %100 : vector<2x128xf32>
    %102 = math.exp %101 : vector<2x128xf32>
    %cst_37 = arith.constant 1.000000e+00 : f32
    %103 = vector.broadcast %cst_37 : f32 to vector<2x128xf32>
    %104 = arith.addf %103, %102 : vector<2x128xf32>
    %105 = arith.divf %103, %104 : vector<2x128xf32>
    %106 = vector.extract_strided_slice %99 {offsets = [0, 128], sizes = [2, 128], strides = [1, 1]} : vector<2x512xf32> to vector<2x128xf32>
    %107 = arith.negf %106 : vector<2x128xf32>
    %108 = math.exp %107 : vector<2x128xf32>
    %cst_38 = arith.constant 1.000000e+00 : f32
    %109 = vector.broadcast %cst_38 : f32 to vector<2x128xf32>
    %110 = arith.addf %109, %108 : vector<2x128xf32>
    %111 = arith.divf %109, %110 : vector<2x128xf32>
    %112 = vector.extract_strided_slice %99 {offsets = [0, 256], sizes = [2, 128], strides = [1, 1]} : vector<2x512xf32> to vector<2x128xf32>
    %113 = math.tanh %112 : vector<2x128xf32>
    %114 = vector.extract_strided_slice %99 {offsets = [0, 384], sizes = [2, 128], strides = [1, 1]} : vector<2x512xf32> to vector<2x128xf32>
    %115 = arith.negf %114 : vector<2x128xf32>
    %116 = math.exp %115 : vector<2x128xf32>
    %cst_39 = arith.constant 1.000000e+00 : f32
    %117 = vector.broadcast %cst_39 : f32 to vector<2x128xf32>
    %118 = arith.addf %117, %116 : vector<2x128xf32>
    %119 = arith.divf %117, %118 : vector<2x128xf32>
    %120 = arith.mulf %111, %93 : vector<2x128xf32>
    %121 = arith.mulf %105, %113 : vector<2x128xf32>
    %122 = arith.addf %120, %121 : vector<2x128xf32>
    %123 = math.tanh %122 : vector<2x128xf32>
    %124 = arith.mulf %119, %123 : vector<2x128xf32>
    %c6_40 = arith.constant 6 : index
    %c0_41 = arith.constant 0 : index
    %125 = vector.load %arg13[%c6_40, %c0_41] : memref<16x128xf32, #tpu.memory_space<vmem>>, vector<2x128xf32>
    tpu.vector_store %arg13[%c6_40, %c0_41], %124 {strides = array<i32>} : memref<16x128xf32, #tpu.memory_space<vmem>>, vector<2x128xf32>,
    %c8 = arith.constant 8 : index
    %c0_42 = arith.constant 0 : index
    %126 = vector.load %arg12[%c8, %c0_42] : memref<16x512xf32, #tpu.memory_space<vmem>>, vector<2x512xf32>
    %cst_43 = arith.constant dense<0.000000e+00> : vector<2x512xf32>
    %127 = tpu.matmul %124, %7, %cst_43 {dimension_numbers = #tpu.dot_dimension_numbers<[1], [0], [0], [1], [0, 0, 1, 1], [], []>} : vector<2x128xf32>, vector<128x512xf32>, vector<2x512xf32> -> vector<2x512xf32>
    %128 = arith.addf %126, %127 : vector<2x512xf32>
    %129 = vector.extract_strided_slice %128 {offsets = [0, 0], sizes = [2, 128], strides = [1, 1]} : vector<2x512xf32> to vector<2x128xf32>
    %130 = arith.negf %129 : vector<2x128xf32>
    %131 = math.exp %130 : vector<2x128xf32>
    %cst_44 = arith.constant 1.000000e+00 : f32
    %132 = vector.broadcast %cst_44 : f32 to vector<2x128xf32>
    %133 = arith.addf %132, %131 : vector<2x128xf32>
    %134 = arith.divf %132, %133 : vector<2x128xf32>
    %135 = vector.extract_strided_slice %128 {offsets = [0, 128], sizes = [2, 128], strides = [1, 1]} : vector<2x512xf32> to vector<2x128xf32>
    %136 = arith.negf %135 : vector<2x128xf32>
    %137 = math.exp %136 : vector<2x128xf32>
    %cst_45 = arith.constant 1.000000e+00 : f32
    %138 = vector.broadcast %cst_45 : f32 to vector<2x128xf32>
    %139 = arith.addf %138, %137 : vector<2x128xf32>
    %140 = arith.divf %138, %139 : vector<2x128xf32>
    %141 = vector.extract_strided_slice %128 {offsets = [0, 256], sizes = [2, 128], strides = [1, 1]} : vector<2x512xf32> to vector<2x128xf32>
    %142 = math.tanh %141 : vector<2x128xf32>
    %143 = vector.extract_strided_slice %128 {offsets = [0, 384], sizes = [2, 128], strides = [1, 1]} : vector<2x512xf32> to vector<2x128xf32>
    %144 = arith.negf %143 : vector<2x128xf32>
    %145 = math.exp %144 : vector<2x128xf32>
    %cst_46 = arith.constant 1.000000e+00 : f32
    %146 = vector.broadcast %cst_46 : f32 to vector<2x128xf32>
    %147 = arith.addf %146, %145 : vector<2x128xf32>
    %148 = arith.divf %146, %147 : vector<2x128xf32>
    %149 = arith.mulf %140, %122 : vector<2x128xf32>
    %150 = arith.mulf %134, %142 : vector<2x128xf32>
    %151 = arith.addf %149, %150 : vector<2x128xf32>
    %152 = math.tanh %151 : vector<2x128xf32>
    %153 = arith.mulf %148, %152 : vector<2x128xf32>
    %c8_47 = arith.constant 8 : index
    %c0_48 = arith.constant 0 : index
    %154 = vector.load %arg13[%c8_47, %c0_48] : memref<16x128xf32, #tpu.memory_space<vmem>>, vector<2x128xf32>
    tpu.vector_store %arg13[%c8_47, %c0_48], %153 {strides = array<i32>} : memref<16x128xf32, #tpu.memory_space<vmem>>, vector<2x128xf32>,
    %c10 = arith.constant 10 : index
    %c0_49 = arith.constant 0 : index
    %155 = vector.load %arg12[%c10, %c0_49] : memref<16x512xf32, #tpu.memory_space<vmem>>, vector<2x512xf32>
    %cst_50 = arith.constant dense<0.000000e+00> : vector<2x512xf32>
    %156 = tpu.matmul %153, %7, %cst_50 {dimension_numbers = #tpu.dot_dimension_numbers<[1], [0], [0], [1], [0, 0, 1, 1], [], []>} : vector<2x128xf32>, vector<128x512xf32>, vector<2x512xf32> -> vector<2x512xf32>
    %157 = arith.addf %155, %156 : vector<2x512xf32>
    %158 = vector.extract_strided_slice %157 {offsets = [0, 0], sizes = [2, 128], strides = [1, 1]} : vector<2x512xf32> to vector<2x128xf32>
    %159 = arith.negf %158 : vector<2x128xf32>
    %160 = math.exp %159 : vector<2x128xf32>
    %cst_51 = arith.constant 1.000000e+00 : f32
    %161 = vector.broadcast %cst_51 : f32 to vector<2x128xf32>
    %162 = arith.addf %161, %160 : vector<2x128xf32>
    %163 = arith.divf %161, %162 : vector<2x128xf32>
    %164 = vector.extract_strided_slice %157 {offsets = [0, 128], sizes = [2, 128], strides = [1, 1]} : vector<2x512xf32> to vector<2x128xf32>
    %165 = arith.negf %164 : vector<2x128xf32>
    %166 = math.exp %165 : vector<2x128xf32>
    %cst_52 = arith.constant 1.000000e+00 : f32
    %167 = vector.broadcast %cst_52 : f32 to vector<2x128xf32>
    %168 = arith.addf %167, %166 : vector<2x128xf32>
    %169 = arith.divf %167, %168 : vector<2x128xf32>
    %170 = vector.extract_strided_slice %157 {offsets = [0, 256], sizes = [2, 128], strides = [1, 1]} : vector<2x512xf32> to vector<2x128xf32>
    %171 = math.tanh %170 : vector<2x128xf32>
    %172 = vector.extract_strided_slice %157 {offsets = [0, 384], sizes = [2, 128], strides = [1, 1]} : vector<2x512xf32> to vector<2x128xf32>
    %173 = arith.negf %172 : vector<2x128xf32>
    %174 = math.exp %173 : vector<2x128xf32>
    %cst_53 = arith.constant 1.000000e+00 : f32
    %175 = vector.broadcast %cst_53 : f32 to vector<2x128xf32>
    %176 = arith.addf %175, %174 : vector<2x128xf32>
    %177 = arith.divf %175, %176 : vector<2x128xf32>
    %178 = arith.mulf %169, %151 : vector<2x128xf32>
    %179 = arith.mulf %163, %171 : vector<2x128xf32>
    %180 = arith.addf %178, %179 : vector<2x128xf32>
    %181 = math.tanh %180 : vector<2x128xf32>
    %182 = arith.mulf %177, %181 : vector<2x128xf32>
    %c10_54 = arith.constant 10 : index
    %c0_55 = arith.constant 0 : index
    %183 = vector.load %arg13[%c10_54, %c0_55] : memref<16x128xf32, #tpu.memory_space<vmem>>, vector<2x128xf32>
    tpu.vector_store %arg13[%c10_54, %c0_55], %182 {strides = array<i32>} : memref<16x128xf32, #tpu.memory_space<vmem>>, vector<2x128xf32>,
    %c12 = arith.constant 12 : index
    %c0_56 = arith.constant 0 : index
    %184 = vector.load %arg12[%c12, %c0_56] : memref<16x512xf32, #tpu.memory_space<vmem>>, vector<2x512xf32>
    %cst_57 = arith.constant dense<0.000000e+00> : vector<2x512xf32>
    %185 = tpu.matmul %182, %7, %cst_57 {dimension_numbers = #tpu.dot_dimension_numbers<[1], [0], [0], [1], [0, 0, 1, 1], [], []>} : vector<2x128xf32>, vector<128x512xf32>, vector<2x512xf32> -> vector<2x512xf32>
    %186 = arith.addf %184, %185 : vector<2x512xf32>
    %187 = vector.extract_strided_slice %186 {offsets = [0, 0], sizes = [2, 128], strides = [1, 1]} : vector<2x512xf32> to vector<2x128xf32>
    %188 = arith.negf %187 : vector<2x128xf32>
    %189 = math.exp %188 : vector<2x128xf32>
    %cst_58 = arith.constant 1.000000e+00 : f32
    %190 = vector.broadcast %cst_58 : f32 to vector<2x128xf32>
    %191 = arith.addf %190, %189 : vector<2x128xf32>
    %192 = arith.divf %190, %191 : vector<2x128xf32>
    %193 = vector.extract_strided_slice %186 {offsets = [0, 128], sizes = [2, 128], strides = [1, 1]} : vector<2x512xf32> to vector<2x128xf32>
    %194 = arith.negf %193 : vector<2x128xf32>
    %195 = math.exp %194 : vector<2x128xf32>
    %cst_59 = arith.constant 1.000000e+00 : f32
    %196 = vector.broadcast %cst_59 : f32 to vector<2x128xf32>
    %197 = arith.addf %196, %195 : vector<2x128xf32>
    %198 = arith.divf %196, %197 : vector<2x128xf32>
    %199 = vector.extract_strided_slice %186 {offsets = [0, 256], sizes = [2, 128], strides = [1, 1]} : vector<2x512xf32> to vector<2x128xf32>
    %200 = math.tanh %199 : vector<2x128xf32>
    %201 = vector.extract_strided_slice %186 {offsets = [0, 384], sizes = [2, 128], strides = [1, 1]} : vector<2x512xf32> to vector<2x128xf32>
    %202 = arith.negf %201 : vector<2x128xf32>
    %203 = math.exp %202 : vector<2x128xf32>
    %cst_60 = arith.constant 1.000000e+00 : f32
    %204 = vector.broadcast %cst_60 : f32 to vector<2x128xf32>
    %205 = arith.addf %204, %203 : vector<2x128xf32>
    %206 = arith.divf %204, %205 : vector<2x128xf32>
    %207 = arith.mulf %198, %180 : vector<2x128xf32>
    %208 = arith.mulf %192, %200 : vector<2x128xf32>
    %209 = arith.addf %207, %208 : vector<2x128xf32>
    %210 = math.tanh %209 : vector<2x128xf32>
    %211 = arith.mulf %206, %210 : vector<2x128xf32>
    %c12_61 = arith.constant 12 : index
    %c0_62 = arith.constant 0 : index
    %212 = vector.load %arg13[%c12_61, %c0_62] : memref<16x128xf32, #tpu.memory_space<vmem>>, vector<2x128xf32>
    tpu.vector_store %arg13[%c12_61, %c0_62], %211 {strides = array<i32>} : memref<16x128xf32, #tpu.memory_space<vmem>>, vector<2x128xf32>,
    %c14 = arith.constant 14 : index
    %c0_63 = arith.constant 0 : index
    %213 = vector.load %arg12[%c14, %c0_63] : memref<16x512xf32, #tpu.memory_space<vmem>>, vector<2x512xf32>
    %cst_64 = arith.constant dense<0.000000e+00> : vector<2x512xf32>
    %214 = tpu.matmul %211, %7, %cst_64 {dimension_numbers = #tpu.dot_dimension_numbers<[1], [0], [0], [1], [0, 0, 1, 1], [], []>} : vector<2x128xf32>, vector<128x512xf32>, vector<2x512xf32> -> vector<2x512xf32>
    %215 = arith.addf %213, %214 : vector<2x512xf32>
    %216 = vector.extract_strided_slice %215 {offsets = [0, 0], sizes = [2, 128], strides = [1, 1]} : vector<2x512xf32> to vector<2x128xf32>
    %217 = arith.negf %216 : vector<2x128xf32>
    %218 = math.exp %217 : vector<2x128xf32>
    %cst_65 = arith.constant 1.000000e+00 : f32
    %219 = vector.broadcast %cst_65 : f32 to vector<2x128xf32>
    %220 = arith.addf %219, %218 : vector<2x128xf32>
    %221 = arith.divf %219, %220 : vector<2x128xf32>
    %222 = vector.extract_strided_slice %215 {offsets = [0, 128], sizes = [2, 128], strides = [1, 1]} : vector<2x512xf32> to vector<2x128xf32>
    %223 = arith.negf %222 : vector<2x128xf32>
    %224 = math.exp %223 : vector<2x128xf32>
    %cst_66 = arith.constant 1.000000e+00 : f32
    %225 = vector.broadcast %cst_66 : f32 to vector<2x128xf32>
    %226 = arith.addf %225, %224 : vector<2x128xf32>
    %227 = arith.divf %225, %226 : vector<2x128xf32>
    %228 = vector.extract_strided_slice %215 {offsets = [0, 256], sizes = [2, 128], strides = [1, 1]} : vector<2x512xf32> to vector<2x128xf32>
    %229 = math.tanh %228 : vector<2x128xf32>
    %230 = vector.extract_strided_slice %215 {offsets = [0, 384], sizes = [2, 128], strides = [1, 1]} : vector<2x512xf32> to vector<2x128xf32>
    %231 = arith.negf %230 : vector<2x128xf32>
    %232 = math.exp %231 : vector<2x128xf32>
    %cst_67 = arith.constant 1.000000e+00 : f32
    %233 = vector.broadcast %cst_67 : f32 to vector<2x128xf32>
    %234 = arith.addf %233, %232 : vector<2x128xf32>
    %235 = arith.divf %233, %234 : vector<2x128xf32>
    %236 = arith.mulf %227, %209 : vector<2x128xf32>
    %237 = arith.mulf %221, %229 : vector<2x128xf32>
    %238 = arith.addf %236, %237 : vector<2x128xf32>
    %239 = math.tanh %238 : vector<2x128xf32>
    %240 = arith.mulf %235, %239 : vector<2x128xf32>
    %c14_68 = arith.constant 14 : index
    %c0_69 = arith.constant 0 : index
    %241 = vector.load %arg13[%c14_68, %c0_69] : memref<16x128xf32, #tpu.memory_space<vmem>>, vector<2x128xf32>
    tpu.vector_store %arg13[%c14_68, %c0_69], %240 {strides = array<i32>} : memref<16x128xf32, #tpu.memory_space<vmem>>, vector<2x128xf32>,
    %c0_70 = arith.constant 0 : index
    %c0_71 = arith.constant 0 : index
    %242 = vector.load %arg10[%c0_70, %c0_71] : memref<2x128xf32, #tpu.memory_space<vmem>>, vector<2x128xf32>
    tpu.vector_store %arg10[%c0_70, %c0_71], %240 {strides = array<i32>} : memref<2x128xf32, #tpu.memory_space<vmem>>, vector<2x128xf32>,
    %c0_72 = arith.constant 0 : index
    %c0_73 = arith.constant 0 : index
    %243 = vector.load %arg11[%c0_72, %c0_73] : memref<2x128xf32, #tpu.memory_space<vmem>>, vector<2x128xf32>
    tpu.vector_store %arg11[%c0_72, %c0_73], %238 {strides = array<i32>} : memref<2x128xf32, #tpu.memory_space<vmem>>, vector<2x128xf32>,
    %c0_74 = arith.constant 0 : index
    %c0_75 = arith.constant 0 : index
    %244 = vector.load %arg13[%c0_74, %c0_75] : memref<16x128xf32, #tpu.memory_space<vmem>>, vector<16x128xf32>
    %c0_76 = arith.constant 0 : index
    %c0_77 = arith.constant 0 : index
    %245 = vector.load %arg7[%c0_76, %c0_77] : memref<128x128xf32, #tpu.memory_space<vmem>>, vector<128x128xf32>
    %cst_78 = arith.constant dense<0.000000e+00> : vector<16x128xf32>
    %246 = tpu.matmul %244, %245, %cst_78 {dimension_numbers = #tpu.dot_dimension_numbers<[1], [0], [0], [1], [0, 0, 1, 1], [], []>} : vector<16x128xf32>, vector<128x128xf32>, vector<16x128xf32> -> vector<16x128xf32>
    %c0_79 = arith.constant 0 : index
    %c0_80 = arith.constant 0 : index
    %247 = vector.load %arg8[%c0_79, %c0_80] : memref<1x128xf32, #tpu.memory_space<vmem>>, vector<1x128xf32>
    %248 = vector.broadcast %247 : vector<1x128xf32> to vector<16x128xf32>
    %249 = arith.addf %246, %248 : vector<16x128xf32>
    %c0_81 = arith.constant 0 : index
    %c0_82 = arith.constant 0 : index
    %250 = vector.load %arg9[%c0_81, %c0_82] : memref<16x128xf32, #tpu.memory_space<vmem>>, vector<16x128xf32>
    tpu.vector_store %arg9[%c0_81, %c0_82], %249 {strides = array<i32>} : memref<16x128xf32, #tpu.memory_space<vmem>>, vector<16x128xf32>,
    return
  }
  func.func @transform_0(%arg0: i32) -> (i32, i32) {
    %c0_i32 = arith.constant 0 : i32
    %c0_i32_0 = arith.constant 0 : i32
    %c0_i32_1 = arith.constant 0 : i32
    return %c0_i32, %c0_i32_0 : i32, i32
  }
  func.func @transform_1(%arg0: i32) -> (i32, i32) {
    %c0_i32 = arith.constant 0 : i32
    %c0_i32_0 = arith.constant 0 : i32
    %c0_i32_1 = arith.constant 0 : i32
    return %c0_i32, %c0_i32_0 : i32, i32
  }
  func.func @transform_2(%arg0: i32) -> (i32, i32) {
    %c0_i32 = arith.constant 0 : i32
    %c0_i32_0 = arith.constant 0 : i32
    %c0_i32_1 = arith.constant 0 : i32
    return %c0_i32, %c0_i32_0 : i32, i32
  }
  func.func @transform_3(%arg0: i32) -> (i32, i32) {
    %c0_i32 = arith.constant 0 : i32
    %c0_i32_0 = arith.constant 0 : i32
    %c0_i32_1 = arith.constant 0 : i32
    return %c0_i32, %c0_i32_0 : i32, i32
  }
  func.func @transform_4(%arg0: i32) -> (i32, i32) {
    %c0_i32 = arith.constant 0 : i32
    %c0_i32_0 = arith.constant 0 : i32
    %c0_i32_1 = arith.constant 0 : i32
    return %c0_i32, %c0_i32_0 : i32, i32
  }
  func.func @transform_5(%arg0: i32) -> (i32, i32) {
    %c0_i32 = arith.constant 0 : i32
    %c0_i32_0 = arith.constant 0 : i32
    %c0_i32_1 = arith.constant 0 : i32
    return %c0_i32, %c0_i32_0 : i32, i32
  }
  func.func @transform_6(%arg0: i32) -> (i32, i32) {
    %c0_i32 = arith.constant 0 : i32
    %c0_i32_0 = arith.constant 0 : i32
    %c0_i32_1 = arith.constant 0 : i32
    return %c0_i32, %c0_i32_0 : i32, i32
  }
  func.func @transform_7(%arg0: i32) -> (i32, i32) {
    %c0_i32 = arith.constant 0 : i32
    %c0_i32_0 = arith.constant 0 : i32
    %c0_i32_1 = arith.constant 0 : i32
    return %c0_i32, %c0_i32_0 : i32, i32
  }
  func.func @transform_8(%arg0: i32) -> (i32, i32) {
    %c0_i32 = arith.constant 0 : i32
    %c0_i32_0 = arith.constant 0 : i32
    %c0_i32_1 = arith.constant 0 : i32
    return %c0_i32, %c0_i32_0 : i32, i32
  }
  func.func @transform_9(%arg0: i32) -> (i32, i32) {
    %c0_i32 = arith.constant 0 : i32
    %c0_i32_0 = arith.constant 0 : i32
    %c0_i32_1 = arith.constant 0 : i32
    return %c0_i32, %c0_i32_0 : i32, i32
  }
  func.func @transform_10(%arg0: i32) -> (i32, i32) {
    %c0_i32 = arith.constant 0 : i32
    %c0_i32_0 = arith.constant 0 : i32
    %c0_i32_1 = arith.constant 0 : i32
    return %c0_i32, %c0_i32_0 : i32, i32
  }
}

</mosaic_0001>

<llo_original>
// kernel: tpu_custom_call.1
$region0: #{tpu_custom_call.1}
  #allocation0 [shape = 'u32[]', space=smem, size = 0x4, offset = 0x4, fixed_abs, tag = 'smem constant byte address 0x4 - core index']
  #allocation1 [shape = 'u32[144,128]{1,0:T(1,128)}', space=vmem, size = 0x12000, scoped, tag = 'internal scratch']
  #allocation2 [shape = 'f32[16,512]{1,0:T(8,128)}', space=vmem, size = 0x8000, scoped, tag = 'scratch operand']
  #allocation3 [shape = 'f32[16,128]{1,0:T(8,128)}', space=vmem, size = 0x2000, scoped, tag = 'scratch operand']
  %s0 = inlined_call_operand.hbm [shape: f32[16,16], index: 0, kind: input, shape index: {}]
  %s1 = inlined_call_operand.vmem [shape: f32[2,128], index: 1, kind: input, shape index: {}]
  %s2 = inlined_call_operand.hbm [shape: f32[2,128], index: 2, kind: input, shape index: {}]
  %s3 = inlined_call_operand.hbm [shape: f32[16,512], index: 3, kind: input, shape index: {}]
  %s4 = inlined_call_operand.vmem [shape: f32[1,512], index: 4, kind: input, shape index: {}]
  %s5 = inlined_call_operand.hbm [shape: f32[128,512], index: 5, kind: input, shape index: {}]
  %s6 = inlined_call_operand.hbm [shape: f32[128,128], index: 6, kind: input, shape index: {}]
  %s7 = inlined_call_operand.vmem [shape: f32[1,128], index: 7, kind: input, shape index: {}]
  %s8 = inlined_call_operand.hbm [shape: f32[16,128], index: 8, kind: output, shape index: {0}]
  %s9 = inlined_call_operand.hbm [shape: f32[2,128], index: 9, kind: output, shape index: {1}]
  %s10 = inlined_call_operand.hbm [shape: f32[2,128], index: 10, kind: output, shape index: {2}]
  %11 = xla_tuple %s8, %s9, %s10
  %s12 = sld [smem:[#allocation0]]
  $region78: #{tpu_custom_call.1} parent=0
    _
  %s14 = ssub.s32 1, %s12
  %s15 = scalar_select 0, %s14, %s12
  $region1: #{tpu_custom_call.1} parent=0
    #allocation4 [shape = 'u8[8192]{0}', space=vmem, size = 0x2000, scoped, tag = 'input window, operand 0, single buffered']
    #allocation5 [shape = 's32[1]{0}', space=sflag, size = 0x4, scoped, tag = 'scoped memory for tpu_custom_call.1']
    #allocation6 [shape = 's32[1]{0}', space=sflag, size = 0x4, scoped, tag = 'scoped memory for tpu_custom_call.1']
    #allocation7 [shape = 'u8[1024]{0}', space=vmem, size = 0x400, scoped, tag = 'input window, operand 2, single buffered']
    #allocation8 [shape = 's32[1]{0}', space=sflag, size = 0x4, scoped, tag = 'scoped memory for tpu_custom_call.1']
    #allocation9 [shape = 'u8[32768]{0}', space=vmem, size = 0x8000, scoped, tag = 'input window, operand 3, single buffered']
    #allocation10 [shape = 'u8[262144]{0}', space=vmem, size = 0x40000, scoped, tag = 'input window, operand 5, single buffered']
    #allocation11 [shape = 's32[1]{0}', space=sflag, size = 0x4, scoped, tag = 'scoped memory for tpu_custom_call.1']
    #allocation12 [shape = 'u8[65536]{0}', space=vmem, size = 0x10000, scoped, tag = 'input window, operand 6, single buffered']
    #allocation13 [shape = 'u8[8192]{0}', space=vmem, size = 0x2000, scoped, tag = 'output window, operand 0, single buffered']
    #allocation14 [shape = 'u8[1024]{0}', space=vmem, size = 0x400, scoped, tag = 'output window, operand 1, single buffered']
    #allocation15 [shape = 's32[1]{0}', space=sflag, size = 0x4, scoped, tag = 'scoped memory for tpu_custom_call.1']
    #allocation16 [shape = 'u8[1024]{0}', space=vmem, size = 0x400, scoped, tag = 'output window, operand 2, single buffered']
    %16 = vsyncpa [#allocation5], 0
    %17 = vsyncpa [#allocation8], 0
    %18 = vsyncpa [#allocation11], 0
    %19 = vsyncpa [#allocation6], 0
    %20 = vsyncpa [#allocation15], 0
    // Predicated region
    $region2: #{tpu_custom_call.1} parent=1 // pred_check
      _
    $region3: #{tpu_custom_call.1} parent=1 // pred_check_branch
      %22 = sbr.rel (0) target = $region5
    $region4: #{tpu_custom_call.1} parent=1 // pred_region
      %s24 = ssub.s32 256, 256
      %25 = vsyncadd [#allocation5], %s24
      %s26 = sshll.u32 [#allocation4], 4
      %s27 = int_to_ptr.vmem [resolvable:$true] %s26
      %32 = dma.hbm_to_vmem [thread:$0]  %s0, 256, %s27, [#allocation5], 128, 128, 8
    $region5: #{tpu_custom_call.1} parent=1 // pred_fallthru
      _
    // Predicated region
    $region6: #{tpu_custom_call.1} parent=1 // pred_check
      _
    $region7: #{tpu_custom_call.1} parent=1 // pred_check_branch
      %34 = sbr.rel (0) target = $region9
    $region8: #{tpu_custom_call.1} parent=1 // pred_region
      _
    $region9: #{tpu_custom_call.1} parent=1 // pred_fallthru
      _
    // Predicated region
    $region10: #{tpu_custom_call.1} parent=1 // pred_check
      _
    $region11: #{tpu_custom_call.1} parent=1 // pred_check_branch
      %36 = sbr.rel (0) target = $region13
    $region12: #{tpu_custom_call.1} parent=1 // pred_region
      %s38 = ssub.s32 32, 32
      %39 = vsyncadd [#allocation8], %s38
      %s41 = sshll.u32 [#allocation7], 4
      %s42 = int_to_ptr.vmem [resolvable:$true] %s41
      %44 = dma.hbm_to_vmem [thread:$0]  %s2, 32, %s42, [#allocation8]
    $region13: #{tpu_custom_call.1} parent=1 // pred_fallthru
      _
    // Predicated region
    $region14: #{tpu_custom_call.1} parent=1 // pred_check
      _
    $region15: #{tpu_custom_call.1} parent=1 // pred_check_branch
      %46 = sbr.rel (0) target = $region17
    $region16: #{tpu_custom_call.1} parent=1 // pred_region
      %s48 = ssub.s32 1024, 1024
      %49 = vsyncadd [#allocation8], %s48
      %s50 = sshll.u32 [#allocation9], 4
      %s51 = int_to_ptr.vmem [resolvable:$true] %s50
      %56 = dma.hbm_to_vmem [thread:$0]  %s3, 1024, %s51, [#allocation8], 512, 512, 32
    $region17: #{tpu_custom_call.1} parent=1 // pred_fallthru
      _
    // Predicated region
    $region18: #{tpu_custom_call.1} parent=1 // pred_check
      _
    $region19: #{tpu_custom_call.1} parent=1 // pred_check_branch
      %58 = sbr.rel (0) target = $region21
    $region20: #{tpu_custom_call.1} parent=1 // pred_region
      _
    $region21: #{tpu_custom_call.1} parent=1 // pred_fallthru
      _
    // Predicated region
    $region22: #{tpu_custom_call.1} parent=1 // pred_check
      _
    $region23: #{tpu_custom_call.1} parent=1 // pred_check_branch
      %60 = sbr.rel (0) target = $region25
    $region24: #{tpu_custom_call.1} parent=1 // pred_region
      %s62 = ssub.s32 8192, 8192
      %63 = vsyncadd [#allocation11], %s62
      %s64 = sshll.u32 [#allocation10], 4
      %s65 = int_to_ptr.vmem [resolvable:$true] %s64
      %70 = dma.hbm_to_vmem [thread:$0]  %s5, 8192, %s65, [#allocation11], 512, 512, 32
    $region25: #{tpu_custom_call.1} parent=1 // pred_fallthru
      _
    // Predicated region
    $region26: #{tpu_custom_call.1} parent=1 // pred_check
      _
    $region27: #{tpu_custom_call.1} parent=1 // pred_check_branch
      %72 = sbr.rel (0) target = $region29
    $region28: #{tpu_custom_call.1} parent=1 // pred_region
      %s74 = ssub.s32 2048, 2048
      %75 = vsyncadd [#allocation11], %s74
      %s76 = sshll.u32 [#allocation12], 4
      %s77 = int_to_ptr.vmem [resolvable:$true] %s76
      %82 = dma.hbm_to_vmem [thread:$0]  %s6, 2048, %s77, [#allocation11], 128, 128, 8
    $region29: #{tpu_custom_call.1} parent=1 // pred_fallthru
      _
    // Predicated region
    $region30: #{tpu_custom_call.1} parent=1 // pred_check
      _
    $region31: #{tpu_custom_call.1} parent=1 // pred_check_branch
      %84 = sbr.rel (0) target = $region33
    $region32: #{tpu_custom_call.1} parent=1 // pred_region
      _
    $region33: #{tpu_custom_call.1} parent=1 // pred_fallthru
      _
    // Predicated region
    $region34: #{tpu_custom_call.1} parent=1 // pred_check
      _
    $region35: #{tpu_custom_call.1} parent=1 // pred_check_branch
      %86 = sbr.rel (0) target = $region37
    $region36: #{tpu_custom_call.1} parent=1 // pred_region
      %87 = dma.done [#allocation5], 256
    $region37: #{tpu_custom_call.1} parent=1 // pred_fallthru
      _
    // Predicated region
    $region38: #{tpu_custom_call.1} parent=1 // pred_check
      _
    $region39: #{tpu_custom_call.1} parent=1 // pred_check_branch
      %89 = sbr.rel (0) target = $region41
    $region40: #{tpu_custom_call.1} parent=1 // pred_region
      %90 = dma.done [#allocation8], 32
    $region41: #{tpu_custom_call.1} parent=1 // pred_fallthru
      _
    // Predicated region
    $region42: #{tpu_custom_call.1} parent=1 // pred_check
      _
    $region43: #{tpu_custom_call.1} parent=1 // pred_check_branch
      %92 = sbr.rel (0) target = $region45
    $region44: #{tpu_custom_call.1} parent=1 // pred_region
      %93 = dma.done [#allocation8], 1024
    $region45: #{tpu_custom_call.1} parent=1 // pred_fallthru
      _
    // Predicated region
    $region46: #{tpu_custom_call.1} parent=1 // pred_check
      _
    $region47: #{tpu_custom_call.1} parent=1 // pred_check_branch
      %95 = sbr.rel (0) target = $region49
    $region48: #{tpu_custom_call.1} parent=1 // pred_region
      %96 = dma.done [#allocation11], 8192
    $region49: #{tpu_custom_call.1} parent=1 // pred_fallthru
      _
    // Predicated region
    $region50: #{tpu_custom_call.1} parent=1 // pred_check
      _
    $region51: #{tpu_custom_call.1} parent=1 // pred_check_branch
      %98 = sbr.rel (0) target = $region53
    $region52: #{tpu_custom_call.1} parent=1 // pred_region
      %99 = dma.done [#allocation11], 2048
    $region53: #{tpu_custom_call.1} parent=1 // pred_fallthru
      _
    %v100 = vld [vmem:[#allocation4] sm:$0xff]
    %v101 = vld [vmem:[#allocation4 + $0x8] sm:$0xff]
    %v102 = vld [vmem:[#allocation9] sm:$0xff]
    %v103 = vld [vmem:[#allocation9 + $0x8] sm:$0xff]
    %v104 = vld [vmem:[#allocation9 + $0x10] sm:$0xff]
    %v105 = vld [vmem:[#allocation9 + $0x18] sm:$0xff]
    %v106 = vld [vmem:[#allocation9 + $0x20] sm:$0xff]
    %v107 = vld [vmem:[#allocation9 + $0x28] sm:$0xff]
    %v108 = vld [vmem:[#allocation9 + $0x30] sm:$0xff]
    %v109 = vld [vmem:[#allocation9 + $0x38] sm:$0xff]
    %v110 = vld [vmem:[%s4] sm:$0xf]
    %v112 = vlaneseq
    %v113 = vshrl.u32 %v112, 7
    %v114 = vsub.s32 0, %v113
    %v115 = vrot.slane %v110, %v114
    %v116 = vlaneseq
    %v117 = vshrl.u32 %v116, 7
    %v118 = vsub.s32 1, %v117
    %v119 = vrot.slane %v110, %v118
    %v120 = vlaneseq
    %v121 = vshrl.u32 %v120, 7
    %v122 = vsub.s32 2, %v121
    %v123 = vrot.slane %v110, %v122
    %v124 = vlaneseq
    %v125 = vshrl.u32 %v124, 7
    %v126 = vsub.s32 3, %v125
    %v127 = vrot.slane %v110, %v126
    %vm132 = vcmask 130048
    %v134 = vsel %vm132, %v100, 0
    %v137 = vsel %vm132, %v101, 0
    %139 = vmatprep.subr.mxu0 %v103
    %140 = vmatpush1.msra.mxu0 %v102
    %141 = vmatprep.subr.mxu0 %v107
    %142 = vmatpush1.msra.mxu0 %v106
    %143 = vmatprep.subr.mxu0 0.0
    %144 = vmatpush1.msra.mxu0 0.0
    %145 = vmatprep.subr.mxu0 0.0
    %146 = vmatpush1.msra.mxu0 0.0
    %147 = vmatprep.subr.mxu0 0.0
    %148 = vmatpush1.msra.mxu0 0.0
    %149 = vmatprep.subr.mxu0 0.0
    %150 = vmatpush1.msra.mxu0 0.0
    %151 = vmatprep.subr.mxu0 0.0
    %152 = vmatpush1.msra.mxu0 0.0
    %153 = vmatprep.subr.mxu0 0.0
    %154 = vmatpush1.msra.mxu0 0.0
    %155 = vmatprep.subr.mxu0 0.0
    %156 = vmatpush1.msra.mxu0 0.0
    %157 = vmatprep.subr.mxu0 0.0
    %158 = vmatpush1.msra.mxu0 0.0
    %159 = vmatprep.subr.mxu0 0.0
    %160 = vmatpush1.msra.mxu0 0.0
    %161 = vmatprep.subr.mxu0 0.0
    %162 = vmatpush1.msra.mxu0 0.0
    %163 = vmatprep.subr.mxu0 0.0
    %164 = vmatpush1.msra.mxu0 0.0
    %165 = vmatprep.subr.mxu0 0.0
    %166 = vmatpush1.msra.mxu0 0.0
    %167 = vmatprep.subr.mxu0 0.0
    %168 = vmatpush1.msra.mxu0 0.0
    %169 = vmatprep.subr.mxu0 0.0
    %170 = vmatpush1.msra.mxu0 0.0
    %171 = vmatprep.subr.mxu0 0.0
    %172 = vmatpush1.msra.mxu0 0.0
    %173 = vmatprep.subr.mxu0 0.0
    %174 = vmatpush1.msra.mxu0 0.0
    %175 = vmatprep.subr.mxu0 0.0
    %176 = vmatpush1.msra.mxu0 0.0
    %177 = vmatprep.subr.mxu0 0.0
    %178 = vmatpush1.msra.mxu0 0.0
    %179 = vmatprep.subr.mxu0 0.0
    %180 = vmatpush1.msra.mxu0 0.0
    %181 = vmatprep.subr.mxu0 0.0
    %182 = vmatpush1.msra.mxu0 0.0
    %183 = vmatprep.subr.mxu0 0.0
    %184 = vmatpush1.msra.mxu0 0.0
    %185 = vmatprep.subr.mxu0 0.0
    %186 = vmatpush1.msra.mxu0 0.0
    %187 = vmatprep.subr.mxu0 0.0
    %188 = vmatpush1.msra.mxu0 0.0
    %189 = vmatprep.subr.mxu0 0.0
    %190 = vmatpush1.msra.mxu0 0.0
    %191 = vmatprep.subr.mxu0 0.0
    %192 = vmatpush1.msra.mxu0 0.0
    %193 = vmatprep.subr.mxu0 0.0
    %194 = vmatpush1.msra.mxu0 0.0
    %195 = vmatprep.subr.mxu0 0.0
    %196 = vmatpush1.msra.mxu0 0.0
    %197 = vmatprep.subr.mxu0 0.0
    %198 = vmatpush1.msra.mxu0 0.0
    %199 = vmatprep.subr.mxu0 0.0
    %200 = vmatpush1.msra.mxu0 0.0
    %201 = vmatprep.subr.mxu0 0.0
    %202 = vmatpush1.msra.mxu0 0.0
    %203 = vmatprep.mubr.f32.mxu0 0.0
    %204 = vmatmul.mubr.f32.gmra.mrb[0].mxu0 %v134
    %v205 = vpop.f32.mrb[0].mxu0
    %v206 = vadd.f32 %v115, %v205
    %v207 = vpop.f32.mrb[0].mxu0
    %v208 = vadd.f32 %v119, %v207
    %209 = vmatprep.mubr.f32.mxu0 0.0
    %210 = vmatmul.mubr.f32.gmra.mrb[0].mxu0 %v137
    %v211 = vpop.f32.mrb[0].mxu0
    %v212 = vadd.f32 %v115, %v211
    %v213 = vpop.f32.mrb[0].mxu0
    %v214 = vadd.f32 %v119, %v213
    %215 = vdwg.mxu0
    %216 = vmatprep.subr.mxu0 %v105
    %217 = vmatpush1.msra.mxu0 %v104
    %218 = vmatprep.subr.mxu0 %v109
    %219 = vmatpush1.msra.mxu0 %v108
    %220 = vmatprep.subr.mxu0 0.0
    %221 = vmatpush1.msra.mxu0 0.0
    %222 = vmatprep.subr.mxu0 0.0
    %223 = vmatpush1.msra.mxu0 0.0
    %224 = vmatprep.subr.mxu0 0.0
    %225 = vmatpush1.msra.mxu0 0.0
    %226 = vmatprep.subr.mxu0 0.0
    %227 = vmatpush1.msra.mxu0 0.0
    %228 = vmatprep.subr.mxu0 0.0
    %229 = vmatpush1.msra.mxu0 0.0
    %230 = vmatprep.subr.mxu0 0.0
    %231 = vmatpush1.msra.mxu0 0.0
    %232 = vmatprep.subr.mxu0 0.0
    %233 = vmatpush1.msra.mxu0 0.0
    %234 = vmatprep.subr.mxu0 0.0
    %235 = vmatpush1.msra.mxu0 0.0
    %236 = vmatprep.subr.mxu0 0.0
    %237 = vmatpush1.msra.mxu0 0.0
    %238 = vmatprep.subr.mxu0 0.0
    %239 = vmatpush1.msra.mxu0 0.0
    %240 = vmatprep.subr.mxu0 0.0
    %241 = vmatpush1.msra.mxu0 0.0
    %242 = vmatprep.subr.mxu0 0.0
    %243 = vmatpush1.msra.mxu0 0.0
    %244 = vmatprep.subr.mxu0 0.0
    %245 = vmatpush1.msra.mxu0 0.0
    %246 = vmatprep.subr.mxu0 0.0
    %247 = vmatpush1.msra.mxu0 0.0
    %248 = vmatprep.subr.mxu0 0.0
    %249 = vmatpush1.msra.mxu0 0.0
    %250 = vmatprep.subr.mxu0 0.0
    %251 = vmatpush1.msra.mxu0 0.0
    %252 = vmatprep.subr.mxu0 0.0
    %253 = vmatpush1.msra.mxu0 0.0
    %254 = vmatprep.subr.mxu0 0.0
    %255 = vmatpush1.msra.mxu0 0.0
    %256 = vmatprep.subr.mxu0 0.0
    %257 = vmatpush1.msra.mxu0 0.0
    %258 = vmatprep.subr.mxu0 0.0
    %259 = vmatpush1.msra.mxu0 0.0
    %260 = vmatprep.subr.mxu0 0.0
    %261 = vmatpush1.msra.mxu0 0.0
    %262 = vmatprep.subr.mxu0 0.0
    %263 = vmatpush1.msra.mxu0 0.0
    %264 = vmatprep.subr.mxu0 0.0
    %265 = vmatpush1.msra.mxu0 0.0
    %266 = vmatprep.subr.mxu0 0.0
    %267 = vmatpush1.msra.mxu0 0.0
    %268 = vmatprep.subr.mxu0 0.0
    %269 = vmatpush1.msra.mxu0 0.0
    %270 = vmatprep.subr.mxu0 0.0
    %271 = vmatpush1.msra.mxu0 0.0
    %272 = vmatprep.subr.mxu0 0.0
    %273 = vmatpush1.msra.mxu0 0.0
    %274 = vmatprep.subr.mxu0 0.0
    %275 = vmatpush1.msra.mxu0 0.0
    %276 = vmatprep.subr.mxu0 0.0
    %277 = vmatpush1.msra.mxu0 0.0
    %278 = vmatprep.subr.mxu0 0.0
    %279 = vmatpush1.msra.mxu0 0.0
    %280 = vmatprep.mubr.f32.mxu0 0.0
    %281 = vmatmul.mubr.f32.gmra.mrb[0].mxu0 %v134
    %v282 = vpop.f32.mrb[0].mxu0
    %v283 = vadd.f32 %v123, %v282
    %v284 = vpop.f32.mrb[0].mxu0
    %v285 = vadd.f32 %v127, %v284
    %286 = vmatprep.mubr.f32.mxu0 0.0
    %287 = vmatmul.mubr.f32.gmra.mrb[0].mxu0 %v137
    %v288 = vpop.f32.mrb[0].mxu0
    %v289 = vadd.f32 %v123, %v288
    %v290 = vpop.f32.mrb[0].mxu0
    %v291 = vadd.f32 %v127, %v290
    %292 = vdwg.mxu0
    %293 = vst [vmem:[#allocation2] sm:$0xff] %v206
    %294 = vst [vmem:[#allocation2 + $0x8] sm:$0xff] %v208
    %295 = vst [vmem:[#allocation2 + $0x10] sm:$0xff] %v283
    %296 = vst [vmem:[#allocation2 + $0x18] sm:$0xff] %v285
    %297 = vst [vmem:[#allocation2 + $0x20] sm:$0xff] %v212
    %298 = vst [vmem:[#allocation2 + $0x28] sm:$0xff] %v214
    %299 = vst [vmem:[#allocation2 + $0x30] sm:$0xff] %v289
    %300 = vst [vmem:[#allocation2 + $0x38] sm:$0xff] %v291
    %v301 = vld [vmem:[#allocation10] sm:$0xff]
    %v302 = vld [vmem:[#allocation10 + $0x8] sm:$0xff]
    %v303 = vld [vmem:[#allocation10 + $0x10] sm:$0xff]
    %v304 = vld [vmem:[#allocation10 + $0x18] sm:$0xff]
    %v305 = vld [vmem:[#allocation10 + $0x20] sm:$0xff]
    %v306 = vld [vmem:[#allocation10 + $0x28] sm:$0xff]
    %v307 = vld [vmem:[#allocation10 + $0x30] sm:$0xff]
    %v308 = vld [vmem:[#allocation10 + $0x38] sm:$0xff]
    %v309 = vld [vmem:[#allocation10 + $0x40] sm:$0xff]
    %v310 = vld [vmem:[#allocation10 + $0x48] sm:$0xff]
    %v311 = vld [vmem:[#allocation10 + $0x50] sm:$0xff]
    %v312 = vld [vmem:[#allocation10 + $0x58] sm:$0xff]
    %v313 = vld [vmem:[#allocation10 + $0x60] sm:$0xff]
    %v314 = vld [vmem:[#allocation10 + $0x68] sm:$0xff]
    %v315 = vld [vmem:[#allocation10 + $0x70] sm:$0xff]
    %v316 = vld [vmem:[#allocation10 + $0x78] sm:$0xff]
    %v317 = vld [vmem:[#allocation10 + $0x80] sm:$0xff]
    %v318 = vld [vmem:[#allocation10 + $0x88] sm:$0xff]
    %v319 = vld [vmem:[#allocation10 + $0x90] sm:$0xff]
    %v320 = vld [vmem:[#allocation10 + $0x98] sm:$0xff]
    %v321 = vld [vmem:[#allocation10 + $0xa0] sm:$0xff]
    %v322 = vld [vmem:[#allocation10 + $0xa8] sm:$0xff]
    %v323 = vld [vmem:[#allocation10 + $0xb0] sm:$0xff]
    %v324 = vld [vmem:[#allocation10 + $0xb8] sm:$0xff]
    %v325 = vld [vmem:[#allocation10 + $0xc0] sm:$0xff]
    %v326 = vld [vmem:[#allocation10 + $0xc8] sm:$0xff]
    %v327 = vld [vmem:[#allocation10 + $0xd0] sm:$0xff]
    %v328 = vld [vmem:[#allocation10 + $0xd8] sm:$0xff]
    %v329 = vld [vmem:[#allocation10 + $0xe0] sm:$0xff]
    %v330 = vld [vmem:[#allocation10 + $0xe8] sm:$0xff]
    %v331 = vld [vmem:[#allocation10 + $0xf0] sm:$0xff]
    %v332 = vld [vmem:[#allocation10 + $0xf8] sm:$0xff]
    %v333 = vld [vmem:[#allocation10 + $0x100] sm:$0xff]
    %v334 = vld [vmem:[#allocation10 + $0x108] sm:$0xff]
    %v335 = vld [vmem:[#allocation10 + $0x110] sm:$0xff]
    %v336 = vld [vmem:[#allocation10 + $0x118] sm:$0xff]
    %v337 = vld [vmem:[#allocation10 + $0x120] sm:$0xff]
    %v338 = vld [vmem:[#allocation10 + $0x128] sm:$0xff]
    %v339 = vld [vmem:[#allocation10 + $0x130] sm:$0xff]
    %v340 = vld [vmem:[#allocation10 + $0x138] sm:$0xff]
    %v341 = vld [vmem:[#allocation10 + $0x140] sm:$0xff]
    %v342 = vld [vmem:[#allocation10 + $0x148] sm:$0xff]
    %v343 = vld [vmem:[#allocation10 + $0x150] sm:$0xff]
    %v344 = vld [vmem:[#allocation10 + $0x158] sm:$0xff]
    %v345 = vld [vmem:[#allocation10 + $0x160] sm:$0xff]
    %v346 = vld [vmem:[#allocation10 + $0x168] sm:$0xff]
    %v347 = vld [vmem:[#allocation10 + $0x170] sm:$0xff]
    %v348 = vld [vmem:[#allocation10 + $0x178] sm:$0xff]
    %v349 = vld [vmem:[#allocation10 + $0x180] sm:$0xff]
    %v350 = vld [vmem:[#allocation10 + $0x188] sm:$0xff]
    %v351 = vld [vmem:[#allocation10 + $0x190] sm:$0xff]
    %v352 = vld [vmem:[#allocation10 + $0x198] sm:$0xff]
    %v353 = vld [vmem:[#allocation10 + $0x1a0] sm:$0xff]
    %v354 = vld [vmem:[#allocation10 + $0x1a8] sm:$0xff]
    %v355 = vld [vmem:[#allocation10 + $0x1b0] sm:$0xff]
    %v356 = vld [vmem:[#allocation10 + $0x1b8] sm:$0xff]
    %v357 = vld [vmem:[#allocation10 + $0x1c0] sm:$0xff]
    %v358 = vld [vmem:[#allocation10 + $0x1c8] sm:$0xff]
    %v359 = vld [vmem:[#allocation10 + $0x1d0] sm:$0xff]
    %v360 = vld [vmem:[#allocation10 + $0x1d8] sm:$0xff]
    %v361 = vld [vmem:[#allocation10 + $0x1e0] sm:$0xff]
    %v362 = vld [vmem:[#allocation10 + $0x1e8] sm:$0xff]
    %v363 = vld [vmem:[#allocation10 + $0x1f0] sm:$0xff]
    %v364 = vld [vmem:[#allocation10 + $0x1f8] sm:$0xff]
    %v365 = vld [vmem:[%s1] sm:$0x3]
    %v366 = vld [vmem:[#allocation7] sm:$0x3]
    %v367 = vld [vmem:[#allocation2] sm:$0x3]
    %v368 = vld [vmem:[#allocation2 + $0x8] sm:$0x3]
    %v369 = vld [vmem:[#allocation2 + $0x10] sm:$0x3]
    %v370 = vld [vmem:[#allocation2 + $0x18] sm:$0x3]
    %371 = vmatprep.subr.mxu0 %v302
    %372 = vmatpush1.msra.mxu0 %v301
    %373 = vmatprep.subr.mxu0 %v306
    %374 = vmatpush1.msra.mxu0 %v305
    %375 = vmatprep.subr.mxu0 %v310
    %376 = vmatpush1.msra.mxu0 %v309
    %377 = vmatprep.subr.mxu0 %v314
    %378 = vmatpush1.msra.mxu0 %v313
    %379 = vmatprep.subr.mxu0 %v318
    %380 = vmatpush1.msra.mxu0 %v317
    %381 = vmatprep.subr.mxu0 %v322
    %382 = vmatpush1.msra.mxu0 %v321
    %383 = vmatprep.subr.mxu0 %v326
    %384 = vmatpush1.msra.mxu0 %v325
    %385 = vmatprep.subr.mxu0 %v330
    %386 = vmatpush1.msra.mxu0 %v329
    %387 = vmatprep.subr.mxu0 %v334
    %388 = vmatpush1.msra.mxu0 %v333
    %389 = vmatprep.subr.mxu0 %v338
    %390 = vmatpush1.msra.mxu0 %v337
    %391 = vmatprep.subr.mxu0 %v342
    %392 = vmatpush1.msra.mxu0 %v341
    %393 = vmatprep.subr.mxu0 %v346
    %394 = vmatpush1.msra.mxu0 %v345
    %395 = vmatprep.subr.mxu0 %v350
    %396 = vmatpush1.msra.mxu0 %v349
    %397 = vmatprep.subr.mxu0 %v354
    %398 = vmatpush1.msra.mxu0 %v353
    %399 = vmatprep.subr.mxu0 %v358
    %400 = vmatpush1.msra.mxu0 %v357
    %401 = vmatprep.subr.mxu0 %v362
    %402 = vmatpush1.msra.mxu0 %v361
    %403 = vmatprep.subr.mxu0 0.0
    %404 = vmatpush1.msra.mxu0 0.0
    %405 = vmatprep.subr.mxu0 0.0
    %406 = vmatpush1.msra.mxu0 0.0
    %407 = vmatprep.subr.mxu0 0.0
    %408 = vmatpush1.msra.mxu0 0.0
    %409 = vmatprep.subr.mxu0 0.0
    %410 = vmatpush1.msra.mxu0 0.0
    %411 = vmatprep.subr.mxu0 0.0
    %412 = vmatpush1.msra.mxu0 0.0
    %413 = vmatprep.subr.mxu0 0.0
    %414 = vmatpush1.msra.mxu0 0.0
    %415 = vmatprep.subr.mxu0 0.0
    %416 = vmatpush1.msra.mxu0 0.0
    %417 = vmatprep.subr.mxu0 0.0
    %418 = vmatpush1.msra.mxu0 0.0
    %419 = vmatprep.subr.mxu0 0.0
    %420 = vmatpush1.msra.mxu0 0.0
    %421 = vmatprep.subr.mxu0 0.0
    %422 = vmatpush1.msra.mxu0 0.0
    %423 = vmatprep.subr.mxu0 0.0
    %424 = vmatpush1.msra.mxu0 0.0
    %425 = vmatprep.subr.mxu0 0.0
    %426 = vmatpush1.msra.mxu0 0.0
    %427 = vmatprep.subr.mxu0 0.0
    %428 = vmatpush1.msra.mxu0 0.0
    %429 = vmatprep.subr.mxu0 0.0
    %430 = vmatpush1.msra.mxu0 0.0
    %431 = vmatprep.subr.mxu0 0.0
    %432 = vmatpush1.msra.mxu0 0.0
    %433 = vmatprep.subr.mxu0 0.0
    %434 = vmatpush1.msra.mxu0 0.0
    %435 = vmatprep.mubr.f32.mxu0 0.0
    %436 = vmatmul.mubr.f32.gmra.mrb[0].mxu0 %v365
    %v437 = vpop.f32.mrb[0].mxu0
    %v438 = vadd.f32 0.0, %v437
    %v439 = vpop.f32.mrb[0].mxu0
    %v440 = vadd.f32 0.0, %v439
    %441 = vdwg.mxu0
    %442 = vmatprep.subr.mxu0 %v304
    %443 = vmatpush1.msra.mxu0 %v303
    %444 = vmatprep.subr.mxu0 %v308
    %445 = vmatpush1.msra.mxu0 %v307
    %446 = vmatprep.subr.mxu0 %v312
    %447 = vmatpush1.msra.mxu0 %v311
    %448 = vmatprep.subr.mxu0 %v316
    %449 = vmatpush1.msra.mxu0 %v315
    %450 = vmatprep.subr.mxu0 %v320
    %451 = vmatpush1.msra.mxu0 %v319
    %452 = vmatprep.subr.mxu0 %v324
    %453 = vmatpush1.msra.mxu0 %v323
    %454 = vmatprep.subr.mxu0 %v328
    %455 = vmatpush1.msra.mxu0 %v327
    %456 = vmatprep.subr.mxu0 %v332
    %457 = vmatpush1.msra.mxu0 %v331
    %458 = vmatprep.subr.mxu0 %v336
    %459 = vmatpush1.msra.mxu0 %v335
    %460 = vmatprep.subr.mxu0 %v340
    %461 = vmatpush1.msra.mxu0 %v339
    %462 = vmatprep.subr.mxu0 %v344
    %463 = vmatpush1.msra.mxu0 %v343
    %464 = vmatprep.subr.mxu0 %v348
    %465 = vmatpush1.msra.mxu0 %v347
    %466 = vmatprep.subr.mxu0 %v352
    %467 = vmatpush1.msra.mxu0 %v351
    %468 = vmatprep.subr.mxu0 %v356
    %469 = vmatpush1.msra.mxu0 %v355
    %470 = vmatprep.subr.mxu0 %v360
    %471 = vmatpush1.msra.mxu0 %v359
    %472 = vmatprep.subr.mxu0 %v364
    %473 = vmatpush1.msra.mxu0 %v363
    %474 = vmatprep.subr.mxu0 0.0
    %475 = vmatpush1.msra.mxu0 0.0
    %476 = vmatprep.subr.mxu0 0.0
    %477 = vmatpush1.msra.mxu0 0.0
    %478 = vmatprep.subr.mxu0 0.0
    %479 = vmatpush1.msra.mxu0 0.0
    %480 = vmatprep.subr.mxu0 0.0
    %481 = vmatpush1.msra.mxu0 0.0
    %482 = vmatprep.subr.mxu0 0.0
    %483 = vmatpush1.msra.mxu0 0.0
    %484 = vmatprep.subr.mxu0 0.0
    %485 = vmatpush1.msra.mxu0 0.0
    %486 = vmatprep.subr.mxu0 0.0
    %487 = vmatpush1.msra.mxu0 0.0
    %488 = vmatprep.subr.mxu0 0.0
    %489 = vmatpush1.msra.mxu0 0.0
    %490 = vmatprep.subr.mxu0 0.0
    %491 = vmatpush1.msra.mxu0 0.0
    %492 = vmatprep.subr.mxu0 0.0
    %493 = vmatpush1.msra.mxu0 0.0
    %494 = vmatprep.subr.mxu0 0.0
    %495 = vmatpush1.msra.mxu0 0.0
    %496 = vmatprep.subr.mxu0 0.0
    %497 = vmatpush1.msra.mxu0 0.0
    %498 = vmatprep.subr.mxu0 0.0
    %499 = vmatpush1.msra.mxu0 0.0
    %500 = vmatprep.subr.mxu0 0.0
    %501 = vmatpush1.msra.mxu0 0.0
    %502 = vmatprep.subr.mxu0 0.0
    %503 = vmatpush1.msra.mxu0 0.0
    %504 = vmatprep.subr.mxu0 0.0
    %505 = vmatpush1.msra.mxu0 0.0
    %506 = vmatprep.mubr.f32.mxu0 0.0
    %507 = vmatmul.mubr.f32.gmra.mrb[0].mxu0 %v365
    %v508 = vpop.f32.mrb[0].mxu0
    %v509 = vadd.f32 0.0, %v508
    %v510 = vpop.f32.mrb[0].mxu0
    %v511 = vadd.f32 0.0, %v510
    %512 = vdwg.mxu0
    %v513 = vadd.f32 %v367, %v438
    %v514 = vadd.f32 %v368, %v440
    %v515 = vadd.f32 %v369, %v509
    %v516 = vadd.f32 %v370, %v511
    %v517 = vxor.u32 %v513, 2147483648
    %v518 = vmul.f32 %v517, 1.442695
    %v519 = vpow.pop %v518
    %v520 = vadd.f32 %v519, 1.0
    %v521 = vrcp.pop %v520
    %v522 = vmul.f32 1.0, %v521
    %v523 = vxor.u32 %v514, 2147483648
    %v524 = vmul.f32 %v523, 1.442695
    %v525 = vpow.pop %v524
    %v526 = vadd.f32 %v525, 1.0
    %v527 = vrcp.pop %v526
    %v528 = vmul.f32 1.0, %v527
    %v529 = vtanh.pop %v515
    %v530 = vxor.u32 %v516, 2147483648
    %v531 = vmul.f32 %v530, 1.442695
    %v532 = vpow.pop %v531
    %v533 = vadd.f32 %v532, 1.0
    %v534 = vrcp.pop %v533
    %v535 = vmul.f32 1.0, %v534
    %v536 = vmul.f32 %v528, %v366
    %v537 = vmul.f32 %v522, %v529
    %v538 = vadd.f32 %v536, %v537
    %v539 = vtanh.pop %v538
    %v540 = vmul.f32 %v535, %v539
    %541 = vst [vmem:[#allocation3] sm:$0x3] %v540
    %v542 = vld [vmem:[#allocation2] sm:$0xc]
    %v543 = vld [vmem:[#allocation2 + $0x8] sm:$0xc]
    %v544 = vld [vmem:[#allocation2 + $0x10] sm:$0xc]
    %v545 = vld [vmem:[#allocation2 + $0x18] sm:$0xc]
    %546 = vmatprep.subr.mxu0 %v302
    %547 = vmatpush1.msra.mxu0 %v301
    %548 = vmatprep.subr.mxu0 %v306
    %549 = vmatpush1.msra.mxu0 %v305
    %550 = vmatprep.subr.mxu0 %v310
    %551 = vmatpush1.msra.mxu0 %v309
    %552 = vmatprep.subr.mxu0 %v314
    %553 = vmatpush1.msra.mxu0 %v313
    %554 = vmatprep.subr.mxu0 %v318
    %555 = vmatpush1.msra.mxu0 %v317
    %556 = vmatprep.subr.mxu0 %v322
    %557 = vmatpush1.msra.mxu0 %v321
    %558 = vmatprep.subr.mxu0 %v326
    %559 = vmatpush1.msra.mxu0 %v325
    %560 = vmatprep.subr.mxu0 %v330
    %561 = vmatpush1.msra.mxu0 %v329
    %562 = vmatprep.subr.mxu0 %v334
    %563 = vmatpush1.msra.mxu0 %v333
    %564 = vmatprep.subr.mxu0 %v338
    %565 = vmatpush1.msra.mxu0 %v337
    %566 = vmatprep.subr.mxu0 %v342
    %567 = vmatpush1.msra.mxu0 %v341
    %568 = vmatprep.subr.mxu0 %v346
    %569 = vmatpush1.msra.mxu0 %v345
    %570 = vmatprep.subr.mxu0 %v350
    %571 = vmatpush1.msra.mxu0 %v349
    %572 = vmatprep.subr.mxu0 %v354
    %573 = vmatpush1.msra.mxu0 %v353
    %574 = vmatprep.subr.mxu0 %v358
    %575 = vmatpush1.msra.mxu0 %v357
    %576 = vmatprep.subr.mxu0 %v362
    %577 = vmatpush1.msra.mxu0 %v361
    %578 = vmatprep.subr.mxu0 0.0
    %579 = vmatpush1.msra.mxu0 0.0
    %580 = vmatprep.subr.mxu0 0.0
    %581 = vmatpush1.msra.mxu0 0.0
    %582 = vmatprep.subr.mxu0 0.0
    %583 = vmatpush1.msra.mxu0 0.0
    %584 = vmatprep.subr.mxu0 0.0
    %585 = vmatpush1.msra.mxu0 0.0
    %586 = vmatprep.subr.mxu0 0.0
    %587 = vmatpush1.msra.mxu0 0.0
    %588 = vmatprep.subr.mxu0 0.0
    %589 = vmatpush1.msra.mxu0 0.0
    %590 = vmatprep.subr.mxu0 0.0
    %591 = vmatpush1.msra.mxu0 0.0
    %592 = vmatprep.subr.mxu0 0.0
    %593 = vmatpush1.msra.mxu0 0.0
    %594 = vmatprep.subr.mxu0 0.0
    %595 = vmatpush1.msra.mxu0 0.0
    %596 = vmatprep.subr.mxu0 0.0
    %597 = vmatpush1.msra.mxu0 0.0
    %598 = vmatprep.subr.mxu0 0.0
    %599 = vmatpush1.msra.mxu0 0.0
    %600 = vmatprep.subr.mxu0 0.0
    %601 = vmatpush1.msra.mxu0 0.0
    %602 = vmatprep.subr.mxu0 0.0
    %603 = vmatpush1.msra.mxu0 0.0
    %604 = vmatprep.subr.mxu0 0.0
    %605 = vmatpush1.msra.mxu0 0.0
    %606 = vmatprep.subr.mxu0 0.0
    %607 = vmatpush1.msra.mxu0 0.0
    %608 = vmatprep.subr.mxu0 0.0
    %609 = vmatpush1.msra.mxu0 0.0
    %610 = vmatprep.mubr.f32.mxu0 0.0
    %611 = vmatmul.mubr.f32.gmra.mrb[0].mxu0 %v540
    %v612 = vpop.f32.mrb[0].mxu0
    %v613 = vadd.f32 0.0, %v612
    %v614 = vpop.f32.mrb[0].mxu0
    %v615 = vadd.f32 0.0, %v614
    %616 = vdwg.mxu0
    %617 = vmatprep.subr.mxu0 %v304
    %618 = vmatpush1.msra.mxu0 %v303
    %619 = vmatprep.subr.mxu0 %v308
    %620 = vmatpush1.msra.mxu0 %v307
    %621 = vmatprep.subr.mxu0 %v312
    %622 = vmatpush1.msra.mxu0 %v311
    %623 = vmatprep.subr.mxu0 %v316
    %624 = vmatpush1.msra.mxu0 %v315
    %625 = vmatprep.subr.mxu0 %v320
    %626 = vmatpush1.msra.mxu0 %v319
    %627 = vmatprep.subr.mxu0 %v324
    %628 = vmatpush1.msra.mxu0 %v323
    %629 = vmatprep.subr.mxu0 %v328
    %630 = vmatpush1.msra.mxu0 %v327
    %631 = vmatprep.subr.mxu0 %v332
    %632 = vmatpush1.msra.mxu0 %v331
    %633 = vmatprep.subr.mxu0 %v336
    %634 = vmatpush1.msra.mxu0 %v335
    %635 = vmatprep.subr.mxu0 %v340
    %636 = vmatpush1.msra.mxu0 %v339
    %637 = vmatprep.subr.mxu0 %v344
    %638 = vmatpush1.msra.mxu0 %v343
    %639 = vmatprep.subr.mxu0 %v348
    %640 = vmatpush1.msra.mxu0 %v347
    %641 = vmatprep.subr.mxu0 %v352
    %642 = vmatpush1.msra.mxu0 %v351
    %643 = vmatprep.subr.mxu0 %v356
    %644 = vmatpush1.msra.mxu0 %v355
    %645 = vmatprep.subr.mxu0 %v360
    %646 = vmatpush1.msra.mxu0 %v359
    %647 = vmatprep.subr.mxu0 %v364
    %648 = vmatpush1.msra.mxu0 %v363
    %649 = vmatprep.subr.mxu0 0.0
    %650 = vmatpush1.msra.mxu0 0.0
    %651 = vmatprep.subr.mxu0 0.0
    %652 = vmatpush1.msra.mxu0 0.0
    %653 = vmatprep.subr.mxu0 0.0
    %654 = vmatpush1.msra.mxu0 0.0
    %655 = vmatprep.subr.mxu0 0.0
    %656 = vmatpush1.msra.mxu0 0.0
    %657 = vmatprep.subr.mxu0 0.0
    %658 = vmatpush1.msra.mxu0 0.0
    %659 = vmatprep.subr.mxu0 0.0
    %660 = vmatpush1.msra.mxu0 0.0
    %661 = vmatprep.subr.mxu0 0.0
    %662 = vmatpush1.msra.mxu0 0.0
    %663 = vmatprep.subr.mxu0 0.0
    %664 = vmatpush1.msra.mxu0 0.0
    %665 = vmatprep.subr.mxu0 0.0
    %666 = vmatpush1.msra.mxu0 0.0
    %667 = vmatprep.subr.mxu0 0.0
    %668 = vmatpush1.msra.mxu0 0.0
    %669 = vmatprep.subr.mxu0 0.0
    %670 = vmatpush1.msra.mxu0 0.0
    %671 = vmatprep.subr.mxu0 0.0
    %672 = vmatpush1.msra.mxu0 0.0
    %673 = vmatprep.subr.mxu0 0.0
    %674 = vmatpush1.msra.mxu0 0.0
    %675 = vmatprep.subr.mxu0 0.0
    %676 = vmatpush1.msra.mxu0 0.0
    %677 = vmatprep.subr.mxu0 0.0
    %678 = vmatpush1.msra.mxu0 0.0
    %679 = vmatprep.subr.mxu0 0.0
    %680 = vmatpush1.msra.mxu0 0.0
    %681 = vmatprep.mubr.f32.mxu0 0.0
    %682 = vmatmul.mubr.f32.gmra.mrb[0].mxu0 %v540
    %v683 = vpop.f32.mrb[0].mxu0
    %v684 = vadd.f32 0.0, %v683
    %v685 = vpop.f32.mrb[0].mxu0
    %v686 = vadd.f32 0.0, %v685
    %687 = vdwg.mxu0
    %v692 = vrot.slane %v613, 6
    %v693 = vrot.slane %v615, 6
    %v694 = vrot.slane %v684, 6
    %v695 = vrot.slane %v686, 6
    %v700 = vadd.f32 %v542, %v692
    %v701 = vadd.f32 %v543, %v693
    %v702 = vadd.f32 %v544, %v694
    %v703 = vadd.f32 %v545, %v695
    %v704 = vxor.u32 %v700, 2147483648
    %v705 = vmul.f32 %v704, 1.442695
    %v706 = vpow.pop %v705
    %v707 = vadd.f32 %v706, 1.0
    %v708 = vrcp.pop %v707
    %v709 = vmul.f32 1.0, %v708
    %v710 = vxor.u32 %v701, 2147483648
    %v711 = vmul.f32 %v710, 1.442695
    %v712 = vpow.pop %v711
    %v713 = vadd.f32 %v712, 1.0
    %v714 = vrcp.pop %v713
    %v715 = vmul.f32 1.0, %v714
    %v716 = vtanh.pop %v702
    %v717 = vxor.u32 %v703, 2147483648
    %v718 = vmul.f32 %v717, 1.442695
    %v719 = vpow.pop %v718
    %v720 = vadd.f32 %v719, 1.0
    %v721 = vrcp.pop %v720
    %v722 = vmul.f32 1.0, %v721
    %v724 = vrot.slane %v538, 6
    %v726 = vmul.f32 %v715, %v724
    %v727 = vmul.f32 %v709, %v716
    %v728 = vadd.f32 %v726, %v727
    %v729 = vtanh.pop %v728
    %v730 = vmul.f32 %v722, %v729
    %731 = vst [vmem:[#allocation3] sm:$0xc] %v730
    %v732 = vld [vmem:[#allocation2] sm:$0x30]
    %v733 = vld [vmem:[#allocation2 + $0x8] sm:$0x30]
    %v734 = vld [vmem:[#allocation2 + $0x10] sm:$0x30]
    %v735 = vld [vmem:[#allocation2 + $0x18] sm:$0x30]
    %v737 = vrot.slane %v730, 2
    %739 = vmatprep.subr.mxu0 %v302
    %740 = vmatpush1.msra.mxu0 %v301
    %741 = vmatprep.subr.mxu0 %v306
    %742 = vmatpush1.msra.mxu0 %v305
    %743 = vmatprep.subr.mxu0 %v310
    %744 = vmatpush1.msra.mxu0 %v309
    %745 = vmatprep.subr.mxu0 %v314
    %746 = vmatpush1.msra.mxu0 %v313
    %747 = vmatprep.subr.mxu0 %v318
    %748 = vmatpush1.msra.mxu0 %v317
    %749 = vmatprep.subr.mxu0 %v322
    %750 = vmatpush1.msra.mxu0 %v321
    %751 = vmatprep.subr.mxu0 %v326
    %752 = vmatpush1.msra.mxu0 %v325
    %753 = vmatprep.subr.mxu0 %v330
    %754 = vmatpush1.msra.mxu0 %v329
    %755 = vmatprep.subr.mxu0 %v334
    %756 = vmatpush1.msra.mxu0 %v333
    %757 = vmatprep.subr.mxu0 %v338
    %758 = vmatpush1.msra.mxu0 %v337
    %759 = vmatprep.subr.mxu0 %v342
    %760 = vmatpush1.msra.mxu0 %v341
    %761 = vmatprep.subr.mxu0 %v346
    %762 = vmatpush1.msra.mxu0 %v345
    %763 = vmatprep.subr.mxu0 %v350
    %764 = vmatpush1.msra.mxu0 %v349
    %765 = vmatprep.subr.mxu0 %v354
    %766 = vmatpush1.msra.mxu0 %v353
    %767 = vmatprep.subr.mxu0 %v358
    %768 = vmatpush1.msra.mxu0 %v357
    %769 = vmatprep.subr.mxu0 %v362
    %770 = vmatpush1.msra.mxu0 %v361
    %771 = vmatprep.subr.mxu0 0.0
    %772 = vmatpush1.msra.mxu0 0.0
    %773 = vmatprep.subr.mxu0 0.0
    %774 = vmatpush1.msra.mxu0 0.0
    %775 = vmatprep.subr.mxu0 0.0
    %776 = vmatpush1.msra.mxu0 0.0
    %777 = vmatprep.subr.mxu0 0.0
    %778 = vmatpush1.msra.mxu0 0.0
    %779 = vmatprep.subr.mxu0 0.0
    %780 = vmatpush1.msra.mxu0 0.0
    %781 = vmatprep.subr.mxu0 0.0
    %782 = vmatpush1.msra.mxu0 0.0
    %783 = vmatprep.subr.mxu0 0.0
    %784 = vmatpush1.msra.mxu0 0.0
    %785 = vmatprep.subr.mxu0 0.0
    %786 = vmatpush1.msra.mxu0 0.0
    %787 = vmatprep.subr.mxu0 0.0
    %788 = vmatpush1.msra.mxu0 0.0
    %789 = vmatprep.subr.mxu0 0.0
    %790 = vmatpush1.msra.mxu0 0.0
    %791 = vmatprep.subr.mxu0 0.0
    %792 = vmatpush1.msra.mxu0 0.0
    %793 = vmatprep.subr.mxu0 0.0
    %794 = vmatpush1.msra.mxu0 0.0
    %795 = vmatprep.subr.mxu0 0.0
    %796 = vmatpush1.msra.mxu0 0.0
    %797 = vmatprep.subr.mxu0 0.0
    %798 = vmatpush1.msra.mxu0 0.0
    %799 = vmatprep.subr.mxu0 0.0
    %800 = vmatpush1.msra.mxu0 0.0
    %801 = vmatprep.subr.mxu0 0.0
    %802 = vmatpush1.msra.mxu0 0.0
    %803 = vmatprep.mubr.f32.mxu0 0.0
    %804 = vmatmul.mubr.f32.gmra.mrb[0].mxu0 %v737
    %v805 = vpop.f32.mrb[0].mxu0
    %v806 = vadd.f32 0.0, %v805
    %v807 = vpop.f32.mrb[0].mxu0
    %v808 = vadd.f32 0.0, %v807
    %809 = vdwg.mxu0
    %810 = vmatprep.subr.mxu0 %v304
    %811 = vmatpush1.msra.mxu0 %v303
    %812 = vmatprep.subr.mxu0 %v308
    %813 = vmatpush1.msra.mxu0 %v307
    %814 = vmatprep.subr.mxu0 %v312
    %815 = vmatpush1.msra.mxu0 %v311
    %816 = vmatprep.subr.mxu0 %v316
    %817 = vmatpush1.msra.mxu0 %v315
    %818 = vmatprep.subr.mxu0 %v320
    %819 = vmatpush1.msra.mxu0 %v319
    %820 = vmatprep.subr.mxu0 %v324
    %821 = vmatpush1.msra.mxu0 %v323
    %822 = vmatprep.subr.mxu0 %v328
    %823 = vmatpush1.msra.mxu0 %v327
    %824 = vmatprep.subr.mxu0 %v332
    %825 = vmatpush1.msra.mxu0 %v331
    %826 = vmatprep.subr.mxu0 %v336
    %827 = vmatpush1.msra.mxu0 %v335
    %828 = vmatprep.subr.mxu0 %v340
    %829 = vmatpush1.msra.mxu0 %v339
    %830 = vmatprep.subr.mxu0 %v344
    %831 = vmatpush1.msra.mxu0 %v343
    %832 = vmatprep.subr.mxu0 %v348
    %833 = vmatpush1.msra.mxu0 %v347
    %834 = vmatprep.subr.mxu0 %v352
    %835 = vmatpush1.msra.mxu0 %v351
    %836 = vmatprep.subr.mxu0 %v356
    %837 = vmatpush1.msra.mxu0 %v355
    %838 = vmatprep.subr.mxu0 %v360
    %839 = vmatpush1.msra.mxu0 %v359
    %840 = vmatprep.subr.mxu0 %v364
    %841 = vmatpush1.msra.mxu0 %v363
    %842 = vmatprep.subr.mxu0 0.0
    %843 = vmatpush1.msra.mxu0 0.0
    %844 = vmatprep.subr.mxu0 0.0
    %845 = vmatpush1.msra.mxu0 0.0
    %846 = vmatprep.subr.mxu0 0.0
    %847 = vmatpush1.msra.mxu0 0.0
    %848 = vmatprep.subr.mxu0 0.0
    %849 = vmatpush1.msra.mxu0 0.0
    %850 = vmatprep.subr.mxu0 0.0
    %851 = vmatpush1.msra.mxu0 0.0
    %852 = vmatprep.subr.mxu0 0.0
    %853 = vmatpush1.msra.mxu0 0.0
    %854 = vmatprep.subr.mxu0 0.0
    %855 = vmatpush1.msra.mxu0 0.0
    %856 = vmatprep.subr.mxu0 0.0
    %857 = vmatpush1.msra.mxu0 0.0
    %858 = vmatprep.subr.mxu0 0.0
    %859 = vmatpush1.msra.mxu0 0.0
    %860 = vmatprep.subr.mxu0 0.0
    %861 = vmatpush1.msra.mxu0 0.0
    %862 = vmatprep.subr.mxu0 0.0
    %863 = vmatpush1.msra.mxu0 0.0
    %864 = vmatprep.subr.mxu0 0.0
    %865 = vmatpush1.msra.mxu0 0.0
    %866 = vmatprep.subr.mxu0 0.0
    %867 = vmatpush1.msra.mxu0 0.0
    %868 = vmatprep.subr.mxu0 0.0
    %869 = vmatpush1.msra.mxu0 0.0
    %870 = vmatprep.subr.mxu0 0.0
    %871 = vmatpush1.msra.mxu0 0.0
    %872 = vmatprep.subr.mxu0 0.0
    %873 = vmatpush1.msra.mxu0 0.0
    %874 = vmatprep.mubr.f32.mxu0 0.0
    %875 = vmatmul.mubr.f32.gmra.mrb[0].mxu0 %v737
    %v876 = vpop.f32.mrb[0].mxu0
    %v877 = vadd.f32 0.0, %v876
    %v878 = vpop.f32.mrb[0].mxu0
    %v879 = vadd.f32 0.0, %v878
    %880 = vdwg.mxu0
    %v885 = vrot.slane %v806, 4
    %v886 = vrot.slane %v808, 4
    %v887 = vrot.slane %v877, 4
    %v888 = vrot.slane %v879, 4
    %v893 = vadd.f32 %v732, %v885
    %v894 = vadd.f32 %v733, %v886
    %v895 = vadd.f32 %v734, %v887
    %v896 = vadd.f32 %v735, %v888
    %v897 = vxor.u32 %v893, 2147483648
    %v898 = vmul.f32 %v897, 1.442695
    %v899 = vpow.pop %v898
    %v900 = vadd.f32 %v899, 1.0
    %v901 = vrcp.pop %v900
    %v902 = vmul.f32 1.0, %v901
    %v903 = vxor.u32 %v894, 2147483648
    %v904 = vmul.f32 %v903, 1.442695
    %v905 = vpow.pop %v904
    %v906 = vadd.f32 %v905, 1.0
    %v907 = vrcp.pop %v906
    %v908 = vmul.f32 1.0, %v907
    %v909 = vtanh.pop %v895
    %v910 = vxor.u32 %v896, 2147483648
    %v911 = vmul.f32 %v910, 1.442695
    %v912 = vpow.pop %v911
    %v913 = vadd.f32 %v912, 1.0
    %v914 = vrcp.pop %v913
    %v915 = vmul.f32 1.0, %v914
    %v917 = vrot.slane %v728, 6
    %v919 = vmul.f32 %v908, %v917
    %v920 = vmul.f32 %v902, %v909
    %v921 = vadd.f32 %v919, %v920
    %v922 = vtanh.pop %v921
    %v923 = vmul.f32 %v915, %v922
    %924 = vst [vmem:[#allocation3] sm:$0x30] %v923
    %v925 = vld [vmem:[#allocation2] sm:$0xc0]
    %v926 = vld [vmem:[#allocation2 + $0x8] sm:$0xc0]
    %v927 = vld [vmem:[#allocation2 + $0x10] sm:$0xc0]
    %v928 = vld [vmem:[#allocation2 + $0x18] sm:$0xc0]
    %v930 = vrot.slane %v923, 4
    %932 = vmatprep.subr.mxu0 %v302
    %933 = vmatpush1.msra.mxu0 %v301
    %934 = vmatprep.subr.mxu0 %v306
    %935 = vmatpush1.msra.mxu0 %v305
    %936 = vmatprep.subr.mxu0 %v310
    %937 = vmatpush1.msra.mxu0 %v309
    %938 = vmatprep.subr.mxu0 %v314
    %939 = vmatpush1.msra.mxu0 %v313
    %940 = vmatprep.subr.mxu0 %v318
    %941 = vmatpush1.msra.mxu0 %v317
    %942 = vmatprep.subr.mxu0 %v322
    %943 = vmatpush1.msra.mxu0 %v321
    %944 = vmatprep.subr.mxu0 %v326
    %945 = vmatpush1.msra.mxu0 %v325
    %946 = vmatprep.subr.mxu0 %v330
    %947 = vmatpush1.msra.mxu0 %v329
    %948 = vmatprep.subr.mxu0 %v334
    %949 = vmatpush1.msra.mxu0 %v333
    %950 = vmatprep.subr.mxu0 %v338
    %951 = vmatpush1.msra.mxu0 %v337
    %952 = vmatprep.subr.mxu0 %v342
    %953 = vmatpush1.msra.mxu0 %v341
    %954 = vmatprep.subr.mxu0 %v346
    %955 = vmatpush1.msra.mxu0 %v345
    %956 = vmatprep.subr.mxu0 %v350
    %957 = vmatpush1.msra.mxu0 %v349
    %958 = vmatprep.subr.mxu0 %v354
    %959 = vmatpush1.msra.mxu0 %v353
    %960 = vmatprep.subr.mxu0 %v358
    %961 = vmatpush1.msra.mxu0 %v357
    %962 = vmatprep.subr.mxu0 %v362
    %963 = vmatpush1.msra.mxu0 %v361
    %964 = vmatprep.subr.mxu0 0.0
    %965 = vmatpush1.msra.mxu0 0.0
    %966 = vmatprep.subr.mxu0 0.0
    %967 = vmatpush1.msra.mxu0 0.0
    %968 = vmatprep.subr.mxu0 0.0
    %969 = vmatpush1.msra.mxu0 0.0
    %970 = vmatprep.subr.mxu0 0.0
    %971 = vmatpush1.msra.mxu0 0.0
    %972 = vmatprep.subr.mxu0 0.0
    %973 = vmatpush1.msra.mxu0 0.0
    %974 = vmatprep.subr.mxu0 0.0
    %975 = vmatpush1.msra.mxu0 0.0
    %976 = vmatprep.subr.mxu0 0.0
    %977 = vmatpush1.msra.mxu0 0.0
    %978 = vmatprep.subr.mxu0 0.0
    %979 = vmatpush1.msra.mxu0 0.0
    %980 = vmatprep.subr.mxu0 0.0
    %981 = vmatpush1.msra.mxu0 0.0
    %982 = vmatprep.subr.mxu0 0.0
    %983 = vmatpush1.msra.mxu0 0.0
    %984 = vmatprep.subr.mxu0 0.0
    %985 = vmatpush1.msra.mxu0 0.0
    %986 = vmatprep.subr.mxu0 0.0
    %987 = vmatpush1.msra.mxu0 0.0
    %988 = vmatprep.subr.mxu0 0.0
    %989 = vmatpush1.msra.mxu0 0.0
    %990 = vmatprep.subr.mxu0 0.0
    %991 = vmatpush1.msra.mxu0 0.0
    %992 = vmatprep.subr.mxu0 0.0
    %993 = vmatpush1.msra.mxu0 0.0
    %994 = vmatprep.subr.mxu0 0.0
    %995 = vmatpush1.msra.mxu0 0.0
    %996 = vmatprep.mubr.f32.mxu0 0.0
    %997 = vmatmul.mubr.f32.gmra.mrb[0].mxu0 %v930
    %v998 = vpop.f32.mrb[0].mxu0
    %v999 = vadd.f32 0.0, %v998
    %v1000 = vpop.f32.mrb[0].mxu0
    %v1001 = vadd.f32 0.0, %v1000
    %1002 = vdwg.mxu0
    %1003 = vmatprep.subr.mxu0 %v304
    %1004 = vmatpush1.msra.mxu0 %v303
    %1005 = vmatprep.subr.mxu0 %v308
    %1006 = vmatpush1.msra.mxu0 %v307
    %1007 = vmatprep.subr.mxu0 %v312
    %1008 = vmatpush1.msra.mxu0 %v311
    %1009 = vmatprep.subr.mxu0 %v316
    %1010 = vmatpush1.msra.mxu0 %v315
    %1011 = vmatprep.subr.mxu0 %v320
    %1012 = vmatpush1.msra.mxu0 %v319
    %1013 = vmatprep.subr.mxu0 %v324
    %1014 = vmatpush1.msra.mxu0 %v323
    %1015 = vmatprep.subr.mxu0 %v328
    %1016 = vmatpush1.msra.mxu0 %v327
    %1017 = vmatprep.subr.mxu0 %v332
    %1018 = vmatpush1.msra.mxu0 %v331
    %1019 = vmatprep.subr.mxu0 %v336
    %1020 = vmatpush1.msra.mxu0 %v335
    %1021 = vmatprep.subr.mxu0 %v340
    %1022 = vmatpush1.msra.mxu0 %v339
    %1023 = vmatprep.subr.mxu0 %v344
    %1024 = vmatpush1.msra.mxu0 %v343
    %1025 = vmatprep.subr.mxu0 %v348
    %1026 = vmatpush1.msra.mxu0 %v347
    %1027 = vmatprep.subr.mxu0 %v352
    %1028 = vmatpush1.msra.mxu0 %v351
    %1029 = vmatprep.subr.mxu0 %v356
    %1030 = vmatpush1.msra.mxu0 %v355
    %1031 = vmatprep.subr.mxu0 %v360
    %1032 = vmatpush1.msra.mxu0 %v359
    %1033 = vmatprep.subr.mxu0 %v364
    %1034 = vmatpush1.msra.mxu0 %v363
    %1035 = vmatprep.subr.mxu0 0.0
    %1036 = vmatpush1.msra.mxu0 0.0
    %1037 = vmatprep.subr.mxu0 0.0
    %1038 = vmatpush1.msra.mxu0 0.0
    %1039 = vmatprep.subr.mxu0 0.0
    %1040 = vmatpush1.msra.mxu0 0.0
    %1041 = vmatprep.subr.mxu0 0.0
    %1042 = vmatpush1.msra.mxu0 0.0
    %1043 = vmatprep.subr.mxu0 0.0
    %1044 = vmatpush1.msra.mxu0 0.0
    %1045 = vmatprep.subr.mxu0 0.0
    %1046 = vmatpush1.msra.mxu0 0.0
    %1047 = vmatprep.subr.mxu0 0.0
    %1048 = vmatpush1.msra.mxu0 0.0
    %1049 = vmatprep.subr.mxu0 0.0
    %1050 = vmatpush1.msra.mxu0 0.0
    %1051 = vmatprep.subr.mxu0 0.0
    %1052 = vmatpush1.msra.mxu0 0.0
    %1053 = vmatprep.subr.mxu0 0.0
    %1054 = vmatpush1.msra.mxu0 0.0
    %1055 = vmatprep.subr.mxu0 0.0
    %1056 = vmatpush1.msra.mxu0 0.0
    %1057 = vmatprep.subr.mxu0 0.0
    %1058 = vmatpush1.msra.mxu0 0.0
    %1059 = vmatprep.subr.mxu0 0.0
    %1060 = vmatpush1.msra.mxu0 0.0
    %1061 = vmatprep.subr.mxu0 0.0
    %1062 = vmatpush1.msra.mxu0 0.0
    %1063 = vmatprep.subr.mxu0 0.0
    %1064 = vmatpush1.msra.mxu0 0.0
    %1065 = vmatprep.subr.mxu0 0.0
    %1066 = vmatpush1.msra.mxu0 0.0
    %1067 = vmatprep.mubr.f32.mxu0 0.0
    %1068 = vmatmul.mubr.f32.gmra.mrb[0].mxu0 %v930
    %v1069 = vpop.f32.mrb[0].mxu0
    %v1070 = vadd.f32 0.0, %v1069
    %v1071 = vpop.f32.mrb[0].mxu0
    %v1072 = vadd.f32 0.0, %v1071
    %1073 = vdwg.mxu0
    %v1078 = vrot.slane %v999, 2
    %v1079 = vrot.slane %v1001, 2
    %v1080 = vrot.slane %v1070, 2
    %v1081 = vrot.slane %v1072, 2
    %v1086 = vadd.f32 %v925, %v1078
    %v1087 = vadd.f32 %v926, %v1079
    %v1088 = vadd.f32 %v927, %v1080
    %v1089 = vadd.f32 %v928, %v1081
    %v1090 = vxor.u32 %v1086, 2147483648
    %v1091 = vmul.f32 %v1090, 1.442695
    %v1092 = vpow.pop %v1091
    %v1093 = vadd.f32 %v1092, 1.0
    %v1094 = vrcp.pop %v1093
    %v1095 = vmul.f32 1.0, %v1094
    %v1096 = vxor.u32 %v1087, 2147483648
    %v1097 = vmul.f32 %v1096, 1.442695
    %v1098 = vpow.pop %v1097
    %v1099 = vadd.f32 %v1098, 1.0
    %v1100 = vrcp.pop %v1099
    %v1101 = vmul.f32 1.0, %v1100
    %v1102 = vtanh.pop %v1088
    %v1103 = vxor.u32 %v1089, 2147483648
    %v1104 = vmul.f32 %v1103, 1.442695
    %v1105 = vpow.pop %v1104
    %v1106 = vadd.f32 %v1105, 1.0
    %v1107 = vrcp.pop %v1106
    %v1108 = vmul.f32 1.0, %v1107
    %v1110 = vrot.slane %v921, 6
    %v1112 = vmul.f32 %v1101, %v1110
    %v1113 = vmul.f32 %v1095, %v1102
    %v1114 = vadd.f32 %v1112, %v1113
    %v1115 = vtanh.pop %v1114
    %v1116 = vmul.f32 %v1108, %v1115
    %1117 = vst [vmem:[#allocation3] sm:$0xc0] %v1116
    %v1118 = vld [vmem:[#allocation2 + $0x20] sm:$0x3]
    %v1119 = vld [vmem:[#allocation2 + $0x28] sm:$0x3]
    %v1120 = vld [vmem:[#allocation2 + $0x30] sm:$0x3]
    %v1121 = vld [vmem:[#allocation2 + $0x38] sm:$0x3]
    %v1123 = vrot.slane %v1116, 6
    %1125 = vmatprep.subr.mxu0 %v302
    %1126 = vmatpush1.msra.mxu0 %v301
    %1127 = vmatprep.subr.mxu0 %v306
    %1128 = vmatpush1.msra.mxu0 %v305
    %1129 = vmatprep.subr.mxu0 %v310
    %1130 = vmatpush1.msra.mxu0 %v309
    %1131 = vmatprep.subr.mxu0 %v314
    %1132 = vmatpush1.msra.mxu0 %v313
    %1133 = vmatprep.subr.mxu0 %v318
    %1134 = vmatpush1.msra.mxu0 %v317
    %1135 = vmatprep.subr.mxu0 %v322
    %1136 = vmatpush1.msra.mxu0 %v321
    %1137 = vmatprep.subr.mxu0 %v326
    %1138 = vmatpush1.msra.mxu0 %v325
    %1139 = vmatprep.subr.mxu0 %v330
    %1140 = vmatpush1.msra.mxu0 %v329
    %1141 = vmatprep.subr.mxu0 %v334
    %1142 = vmatpush1.msra.mxu0 %v333
    %1143 = vmatprep.subr.mxu0 %v338
    %1144 = vmatpush1.msra.mxu0 %v337
    %1145 = vmatprep.subr.mxu0 %v342
    %1146 = vmatpush1.msra.mxu0 %v341
    %1147 = vmatprep.subr.mxu0 %v346
    %1148 = vmatpush1.msra.mxu0 %v345
    %1149 = vmatprep.subr.mxu0 %v350
    %1150 = vmatpush1.msra.mxu0 %v349
    %1151 = vmatprep.subr.mxu0 %v354
    %1152 = vmatpush1.msra.mxu0 %v353
    %1153 = vmatprep.subr.mxu0 %v358
    %1154 = vmatpush1.msra.mxu0 %v357
    %1155 = vmatprep.subr.mxu0 %v362
    %1156 = vmatpush1.msra.mxu0 %v361
    %1157 = vmatprep.subr.mxu0 0.0
    %1158 = vmatpush1.msra.mxu0 0.0
    %1159 = vmatprep.subr.mxu0 0.0
    %1160 = vmatpush1.msra.mxu0 0.0
    %1161 = vmatprep.subr.mxu0 0.0
    %1162 = vmatpush1.msra.mxu0 0.0
    %1163 = vmatprep.subr.mxu0 0.0
    %1164 = vmatpush1.msra.mxu0 0.0
    %1165 = vmatprep.subr.mxu0 0.0
    %1166 = vmatpush1.msra.mxu0 0.0
    %1167 = vmatprep.subr.mxu0 0.0
    %1168 = vmatpush1.msra.mxu0 0.0
    %1169 = vmatprep.subr.mxu0 0.0
    %1170 = vmatpush1.msra.mxu0 0.0
    %1171 = vmatprep.subr.mxu0 0.0
    %1172 = vmatpush1.msra.mxu0 0.0
    %1173 = vmatprep.subr.mxu0 0.0
    %1174 = vmatpush1.msra.mxu0 0.0
    %1175 = vmatprep.subr.mxu0 0.0
    %1176 = vmatpush1.msra.mxu0 0.0
    %1177 = vmatprep.subr.mxu0 0.0
    %1178 = vmatpush1.msra.mxu0 0.0
    %1179 = vmatprep.subr.mxu0 0.0
    %1180 = vmatpush1.msra.mxu0 0.0
    %1181 = vmatprep.subr.mxu0 0.0
    %1182 = vmatpush1.msra.mxu0 0.0
    %1183 = vmatprep.subr.mxu0 0.0
    %1184 = vmatpush1.msra.mxu0 0.0
    %1185 = vmatprep.subr.mxu0 0.0
    %1186 = vmatpush1.msra.mxu0 0.0
    %1187 = vmatprep.subr.mxu0 0.0
    %1188 = vmatpush1.msra.mxu0 0.0
    %1189 = vmatprep.mubr.f32.mxu0 0.0
    %1190 = vmatmul.mubr.f32.gmra.mrb[0].mxu0 %v1123
    %v1191 = vpop.f32.mrb[0].mxu0
    %v1192 = vadd.f32 0.0, %v1191
    %v1193 = vpop.f32.mrb[0].mxu0
    %v1194 = vadd.f32 0.0, %v1193
    %1195 = vdwg.mxu0
    %1196 = vmatprep.subr.mxu0 %v304
    %1197 = vmatpush1.msra.mxu0 %v303
    %1198 = vmatprep.subr.mxu0 %v308
    %1199 = vmatpush1.msra.mxu0 %v307
    %1200 = vmatprep.subr.mxu0 %v312
    %1201 = vmatpush1.msra.mxu0 %v311
    %1202 = vmatprep.subr.mxu0 %v316
    %1203 = vmatpush1.msra.mxu0 %v315
    %1204 = vmatprep.subr.mxu0 %v320
    %1205 = vmatpush1.msra.mxu0 %v319
    %1206 = vmatprep.subr.mxu0 %v324
    %1207 = vmatpush1.msra.mxu0 %v323
    %1208 = vmatprep.subr.mxu0 %v328
    %1209 = vmatpush1.msra.mxu0 %v327
    %1210 = vmatprep.subr.mxu0 %v332
    %1211 = vmatpush1.msra.mxu0 %v331
    %1212 = vmatprep.subr.mxu0 %v336
    %1213 = vmatpush1.msra.mxu0 %v335
    %1214 = vmatprep.subr.mxu0 %v340
    %1215 = vmatpush1.msra.mxu0 %v339
    %1216 = vmatprep.subr.mxu0 %v344
    %1217 = vmatpush1.msra.mxu0 %v343
    %1218 = vmatprep.subr.mxu0 %v348
    %1219 = vmatpush1.msra.mxu0 %v347
    %1220 = vmatprep.subr.mxu0 %v352
    %1221 = vmatpush1.msra.mxu0 %v351
    %1222 = vmatprep.subr.mxu0 %v356
    %1223 = vmatpush1.msra.mxu0 %v355
    %1224 = vmatprep.subr.mxu0 %v360
    %1225 = vmatpush1.msra.mxu0 %v359
    %1226 = vmatprep.subr.mxu0 %v364
    %1227 = vmatpush1.msra.mxu0 %v363
    %1228 = vmatprep.subr.mxu0 0.0
    %1229 = vmatpush1.msra.mxu0 0.0
    %1230 = vmatprep.subr.mxu0 0.0
    %1231 = vmatpush1.msra.mxu0 0.0
    %1232 = vmatprep.subr.mxu0 0.0
    %1233 = vmatpush1.msra.mxu0 0.0
    %1234 = vmatprep.subr.mxu0 0.0
    %1235 = vmatpush1.msra.mxu0 0.0
    %1236 = vmatprep.subr.mxu0 0.0
    %1237 = vmatpush1.msra.mxu0 0.0
    %1238 = vmatprep.subr.mxu0 0.0
    %1239 = vmatpush1.msra.mxu0 0.0
    %1240 = vmatprep.subr.mxu0 0.0
    %1241 = vmatpush1.msra.mxu0 0.0
    %1242 = vmatprep.subr.mxu0 0.0
    %1243 = vmatpush1.msra.mxu0 0.0
    %1244 = vmatprep.subr.mxu0 0.0
    %1245 = vmatpush1.msra.mxu0 0.0
    %1246 = vmatprep.subr.mxu0 0.0
    %1247 = vmatpush1.msra.mxu0 0.0
    %1248 = vmatprep.subr.mxu0 0.0
    %1249 = vmatpush1.msra.mxu0 0.0
    %1250 = vmatprep.subr.mxu0 0.0
    %1251 = vmatpush1.msra.mxu0 0.0
    %1252 = vmatprep.subr.mxu0 0.0
    %1253 = vmatpush1.msra.mxu0 0.0
    %1254 = vmatprep.subr.mxu0 0.0
    %1255 = vmatpush1.msra.mxu0 0.0
    %1256 = vmatprep.subr.mxu0 0.0
    %1257 = vmatpush1.msra.mxu0 0.0
    %1258 = vmatprep.subr.mxu0 0.0
    %1259 = vmatpush1.msra.mxu0 0.0
    %1260 = vmatprep.mubr.f32.mxu0 0.0
    %1261 = vmatmul.mubr.f32.gmra.mrb[0].mxu0 %v1123
    %v1262 = vpop.f32.mrb[0].mxu0
    %v1263 = vadd.f32 0.0, %v1262
    %v1264 = vpop.f32.mrb[0].mxu0
    %v1265 = vadd.f32 0.0, %v1264
    %1266 = vdwg.mxu0
    %v1267 = vadd.f32 %v1118, %v1192
    %v1268 = vadd.f32 %v1119, %v1194
    %v1269 = vadd.f32 %v1120, %v1263
    %v1270 = vadd.f32 %v1121, %v1265
    %v1271 = vxor.u32 %v1267, 2147483648
    %v1272 = vmul.f32 %v1271, 1.442695
    %v1273 = vpow.pop %v1272
    %v1274 = vadd.f32 %v1273, 1.0
    %v1275 = vrcp.pop %v1274
    %v1276 = vmul.f32 1.0, %v1275
    %v1277 = vxor.u32 %v1268, 2147483648
    %v1278 = vmul.f32 %v1277, 1.442695
    %v1279 = vpow.pop %v1278
    %v1280 = vadd.f32 %v1279, 1.0
    %v1281 = vrcp.pop %v1280
    %v1282 = vmul.f32 1.0, %v1281
    %v1283 = vtanh.pop %v1269
    %v1284 = vxor.u32 %v1270, 2147483648
    %v1285 = vmul.f32 %v1284, 1.442695
    %v1286 = vpow.pop %v1285
    %v1287 = vadd.f32 %v1286, 1.0
    %v1288 = vrcp.pop %v1287
    %v1289 = vmul.f32 1.0, %v1288
    %v1291 = vrot.slane %v1114, 6
    %v1293 = vmul.f32 %v1282, %v1291
    %v1294 = vmul.f32 %v1276, %v1283
    %v1295 = vadd.f32 %v1293, %v1294
    %v1296 = vtanh.pop %v1295
    %v1297 = vmul.f32 %v1289, %v1296
    %1298 = vst [vmem:[#allocation3 + $0x8] sm:$0x3] %v1297
    %v1299 = vld [vmem:[#allocation2 + $0x20] sm:$0xc]
    %v1300 = vld [vmem:[#allocation2 + $0x28] sm:$0xc]
    %v1301 = vld [vmem:[#allocation2 + $0x30] sm:$0xc]
    %v1302 = vld [vmem:[#allocation2 + $0x38] sm:$0xc]
    %1303 = vmatprep.subr.mxu0 %v302
    %1304 = vmatpush1.msra.mxu0 %v301
    %1305 = vmatprep.subr.mxu0 %v306
    %1306 = vmatpush1.msra.mxu0 %v305
    %1307 = vmatprep.subr.mxu0 %v310
    %1308 = vmatpush1.msra.mxu0 %v309
    %1309 = vmatprep.subr.mxu0 %v314
    %1310 = vmatpush1.msra.mxu0 %v313
    %1311 = vmatprep.subr.mxu0 %v318
    %1312 = vmatpush1.msra.mxu0 %v317
    %1313 = vmatprep.subr.mxu0 %v322
    %1314 = vmatpush1.msra.mxu0 %v321
    %1315 = vmatprep.subr.mxu0 %v326
    %1316 = vmatpush1.msra.mxu0 %v325
    %1317 = vmatprep.subr.mxu0 %v330
    %1318 = vmatpush1.msra.mxu0 %v329
    %1319 = vmatprep.subr.mxu0 %v334
    %1320 = vmatpush1.msra.mxu0 %v333
    %1321 = vmatprep.subr.mxu0 %v338
    %1322 = vmatpush1.msra.mxu0 %v337
    %1323 = vmatprep.subr.mxu0 %v342
    %1324 = vmatpush1.msra.mxu0 %v341
    %1325 = vmatprep.subr.mxu0 %v346
    %1326 = vmatpush1.msra.mxu0 %v345
    %1327 = vmatprep.subr.mxu0 %v350
    %1328 = vmatpush1.msra.mxu0 %v349
    %1329 = vmatprep.subr.mxu0 %v354
    %1330 = vmatpush1.msra.mxu0 %v353
    %1331 = vmatprep.subr.mxu0 %v358
    %1332 = vmatpush1.msra.mxu0 %v357
    %1333 = vmatprep.subr.mxu0 %v362
    %1334 = vmatpush1.msra.mxu0 %v361
    %1335 = vmatprep.subr.mxu0 0.0
    %1336 = vmatpush1.msra.mxu0 0.0
    %1337 = vmatprep.subr.mxu0 0.0
    %1338 = vmatpush1.msra.mxu0 0.0
    %1339 = vmatprep.subr.mxu0 0.0
    %1340 = vmatpush1.msra.mxu0 0.0
    %1341 = vmatprep.subr.mxu0 0.0
    %1342 = vmatpush1.msra.mxu0 0.0
    %1343 = vmatprep.subr.mxu0 0.0
    %1344 = vmatpush1.msra.mxu0 0.0
    %1345 = vmatprep.subr.mxu0 0.0
    %1346 = vmatpush1.msra.mxu0 0.0
    %1347 = vmatprep.subr.mxu0 0.0
    %1348 = vmatpush1.msra.mxu0 0.0
    %1349 = vmatprep.subr.mxu0 0.0
    %1350 = vmatpush1.msra.mxu0 0.0
    %1351 = vmatprep.subr.mxu0 0.0
    %1352 = vmatpush1.msra.mxu0 0.0
    %1353 = vmatprep.subr.mxu0 0.0
    %1354 = vmatpush1.msra.mxu0 0.0
    %1355 = vmatprep.subr.mxu0 0.0
    %1356 = vmatpush1.msra.mxu0 0.0
    %1357 = vmatprep.subr.mxu0 0.0
    %1358 = vmatpush1.msra.mxu0 0.0
    %1359 = vmatprep.subr.mxu0 0.0
    %1360 = vmatpush1.msra.mxu0 0.0
    %1361 = vmatprep.subr.mxu0 0.0
    %1362 = vmatpush1.msra.mxu0 0.0
    %1363 = vmatprep.subr.mxu0 0.0
    %1364 = vmatpush1.msra.mxu0 0.0
    %1365 = vmatprep.subr.mxu0 0.0
    %1366 = vmatpush1.msra.mxu0 0.0
    %1367 = vmatprep.mubr.f32.mxu0 0.0
    %1368 = vmatmul.mubr.f32.gmra.mrb[0].mxu0 %v1297
    %v1369 = vpop.f32.mrb[0].mxu0
    %v1370 = vadd.f32 0.0, %v1369
    %v1371 = vpop.f32.mrb[0].mxu0
    %v1372 = vadd.f32 0.0, %v1371
    %1373 = vdwg.mxu0
    %1374 = vmatprep.subr.mxu0 %v304
    %1375 = vmatpush1.msra.mxu0 %v303
    %1376 = vmatprep.subr.mxu0 %v308
    %1377 = vmatpush1.msra.mxu0 %v307
    %1378 = vmatprep.subr.mxu0 %v312
    %1379 = vmatpush1.msra.mxu0 %v311
    %1380 = vmatprep.subr.mxu0 %v316
    %1381 = vmatpush1.msra.mxu0 %v315
    %1382 = vmatprep.subr.mxu0 %v320
    %1383 = vmatpush1.msra.mxu0 %v319
    %1384 = vmatprep.subr.mxu0 %v324
    %1385 = vmatpush1.msra.mxu0 %v323
    %1386 = vmatprep.subr.mxu0 %v328
    %1387 = vmatpush1.msra.mxu0 %v327
    %1388 = vmatprep.subr.mxu0 %v332
    %1389 = vmatpush1.msra.mxu0 %v331
    %1390 = vmatprep.subr.mxu0 %v336
    %1391 = vmatpush1.msra.mxu0 %v335
    %1392 = vmatprep.subr.mxu0 %v340
    %1393 = vmatpush1.msra.mxu0 %v339
    %1394 = vmatprep.subr.mxu0 %v344
    %1395 = vmatpush1.msra.mxu0 %v343
    %1396 = vmatprep.subr.mxu0 %v348
    %1397 = vmatpush1.msra.mxu0 %v347
    %1398 = vmatprep.subr.mxu0 %v352
    %1399 = vmatpush1.msra.mxu0 %v351
    %1400 = vmatprep.subr.mxu0 %v356
    %1401 = vmatpush1.msra.mxu0 %v355
    %1402 = vmatprep.subr.mxu0 %v360
    %1403 = vmatpush1.msra.mxu0 %v359
    %1404 = vmatprep.subr.mxu0 %v364
    %1405 = vmatpush1.msra.mxu0 %v363
    %1406 = vmatprep.subr.mxu0 0.0
    %1407 = vmatpush1.msra.mxu0 0.0
    %1408 = vmatprep.subr.mxu0 0.0
    %1409 = vmatpush1.msra.mxu0 0.0
    %1410 = vmatprep.subr.mxu0 0.0
    %1411 = vmatpush1.msra.mxu0 0.0
    %1412 = vmatprep.subr.mxu0 0.0
    %1413 = vmatpush1.msra.mxu0 0.0
    %1414 = vmatprep.subr.mxu0 0.0
    %1415 = vmatpush1.msra.mxu0 0.0
    %1416 = vmatprep.subr.mxu0 0.0
    %1417 = vmatpush1.msra.mxu0 0.0
    %1418 = vmatprep.subr.mxu0 0.0
    %1419 = vmatpush1.msra.mxu0 0.0
    %1420 = vmatprep.subr.mxu0 0.0
    %1421 = vmatpush1.msra.mxu0 0.0
    %1422 = vmatprep.subr.mxu0 0.0
    %1423 = vmatpush1.msra.mxu0 0.0
    %1424 = vmatprep.subr.mxu0 0.0
    %1425 = vmatpush1.msra.mxu0 0.0
    %1426 = vmatprep.subr.mxu0 0.0
    %1427 = vmatpush1.msra.mxu0 0.0
    %1428 = vmatprep.subr.mxu0 0.0
    %1429 = vmatpush1.msra.mxu0 0.0
    %1430 = vmatprep.subr.mxu0 0.0
    %1431 = vmatpush1.msra.mxu0 0.0
    %1432 = vmatprep.subr.mxu0 0.0
    %1433 = vmatpush1.msra.mxu0 0.0
    %1434 = vmatprep.subr.mxu0 0.0
    %1435 = vmatpush1.msra.mxu0 0.0
    %1436 = vmatprep.subr.mxu0 0.0
    %1437 = vmatpush1.msra.mxu0 0.0
    %1438 = vmatprep.mubr.f32.mxu0 0.0
    %1439 = vmatmul.mubr.f32.gmra.mrb[0].mxu0 %v1297
    %v1440 = vpop.f32.mrb[0].mxu0
    %v1441 = vadd.f32 0.0, %v1440
    %v1442 = vpop.f32.mrb[0].mxu0
    %v1443 = vadd.f32 0.0, %v1442
    %1444 = vdwg.mxu0
    %v1449 = vrot.slane %v1370, 6
    %v1450 = vrot.slane %v1372, 6
    %v1451 = vrot.slane %v1441, 6
    %v1452 = vrot.slane %v1443, 6
    %v1457 = vadd.f32 %v1299, %v1449
    %v1458 = vadd.f32 %v1300, %v1450
    %v1459 = vadd.f32 %v1301, %v1451
    %v1460 = vadd.f32 %v1302, %v1452
    %v1461 = vxor.u32 %v1457, 2147483648
    %v1462 = vmul.f32 %v1461, 1.442695
    %v1463 = vpow.pop %v1462
    %v1464 = vadd.f32 %v1463, 1.0
    %v1465 = vrcp.pop %v1464
    %v1466 = vmul.f32 1.0, %v1465
    %v1467 = vxor.u32 %v1458, 2147483648
    %v1468 = vmul.f32 %v1467, 1.442695
    %v1469 = vpow.pop %v1468
    %v1470 = vadd.f32 %v1469, 1.0
    %v1471 = vrcp.pop %v1470
    %v1472 = vmul.f32 1.0, %v1471
    %v1473 = vtanh.pop %v1459
    %v1474 = vxor.u32 %v1460, 2147483648
    %v1475 = vmul.f32 %v1474, 1.442695
    %v1476 = vpow.pop %v1475
    %v1477 = vadd.f32 %v1476, 1.0
    %v1478 = vrcp.pop %v1477
    %v1479 = vmul.f32 1.0, %v1478
    %v1481 = vrot.slane %v1295, 6
    %v1483 = vmul.f32 %v1472, %v1481
    %v1484 = vmul.f32 %v1466, %v1473
    %v1485 = vadd.f32 %v1483, %v1484
    %v1486 = vtanh.pop %v1485
    %v1487 = vmul.f32 %v1479, %v1486
    %1488 = vst [vmem:[#allocation3 + $0x8] sm:$0xc] %v1487
    %v1489 = vld [vmem:[#allocation2 + $0x20] sm:$0x30]
    %v1490 = vld [vmem:[#allocation2 + $0x28] sm:$0x30]
    %v1491 = vld [vmem:[#allocation2 + $0x30] sm:$0x30]
    %v1492 = vld [vmem:[#allocation2 + $0x38] sm:$0x30]
    %v1494 = vrot.slane %v1487, 2
    %1496 = vmatprep.subr.mxu0 %v302
    %1497 = vmatpush1.msra.mxu0 %v301
    %1498 = vmatprep.subr.mxu0 %v306
    %1499 = vmatpush1.msra.mxu0 %v305
    %1500 = vmatprep.subr.mxu0 %v310
    %1501 = vmatpush1.msra.mxu0 %v309
    %1502 = vmatprep.subr.mxu0 %v314
    %1503 = vmatpush1.msra.mxu0 %v313
    %1504 = vmatprep.subr.mxu0 %v318
    %1505 = vmatpush1.msra.mxu0 %v317
    %1506 = vmatprep.subr.mxu0 %v322
    %1507 = vmatpush1.msra.mxu0 %v321
    %1508 = vmatprep.subr.mxu0 %v326
    %1509 = vmatpush1.msra.mxu0 %v325
    %1510 = vmatprep.subr.mxu0 %v330
    %1511 = vmatpush1.msra.mxu0 %v329
    %1512 = vmatprep.subr.mxu0 %v334
    %1513 = vmatpush1.msra.mxu0 %v333
    %1514 = vmatprep.subr.mxu0 %v338
    %1515 = vmatpush1.msra.mxu0 %v337
    %1516 = vmatprep.subr.mxu0 %v342
    %1517 = vmatpush1.msra.mxu0 %v341
    %1518 = vmatprep.subr.mxu0 %v346
    %1519 = vmatpush1.msra.mxu0 %v345
    %1520 = vmatprep.subr.mxu0 %v350
    %1521 = vmatpush1.msra.mxu0 %v349
    %1522 = vmatprep.subr.mxu0 %v354
    %1523 = vmatpush1.msra.mxu0 %v353
    %1524 = vmatprep.subr.mxu0 %v358
    %1525 = vmatpush1.msra.mxu0 %v357
    %1526 = vmatprep.subr.mxu0 %v362
    %1527 = vmatpush1.msra.mxu0 %v361
    %1528 = vmatprep.subr.mxu0 0.0
    %1529 = vmatpush1.msra.mxu0 0.0
    %1530 = vmatprep.subr.mxu0 0.0
    %1531 = vmatpush1.msra.mxu0 0.0
    %1532 = vmatprep.subr.mxu0 0.0
    %1533 = vmatpush1.msra.mxu0 0.0
    %1534 = vmatprep.subr.mxu0 0.0
    %1535 = vmatpush1.msra.mxu0 0.0
    %1536 = vmatprep.subr.mxu0 0.0
    %1537 = vmatpush1.msra.mxu0 0.0
    %1538 = vmatprep.subr.mxu0 0.0
    %1539 = vmatpush1.msra.mxu0 0.0
    %1540 = vmatprep.subr.mxu0 0.0
    %1541 = vmatpush1.msra.mxu0 0.0
    %1542 = vmatprep.subr.mxu0 0.0
    %1543 = vmatpush1.msra.mxu0 0.0
    %1544 = vmatprep.subr.mxu0 0.0
    %1545 = vmatpush1.msra.mxu0 0.0
    %1546 = vmatprep.subr.mxu0 0.0
    %1547 = vmatpush1.msra.mxu0 0.0
    %1548 = vmatprep.subr.mxu0 0.0
    %1549 = vmatpush1.msra.mxu0 0.0
    %1550 = vmatprep.subr.mxu0 0.0
    %1551 = vmatpush1.msra.mxu0 0.0
    %1552 = vmatprep.subr.mxu0 0.0
    %1553 = vmatpush1.msra.mxu0 0.0
    %1554 = vmatprep.subr.mxu0 0.0
    %1555 = vmatpush1.msra.mxu0 0.0
    %1556 = vmatprep.subr.mxu0 0.0
    %1557 = vmatpush1.msra.mxu0 0.0
    %1558 = vmatprep.subr.mxu0 0.0
    %1559 = vmatpush1.msra.mxu0 0.0
    %1560 = vmatprep.mubr.f32.mxu0 0.0
    %1561 = vmatmul.mubr.f32.gmra.mrb[0].mxu0 %v1494
    %v1562 = vpop.f32.mrb[0].mxu0
    %v1563 = vadd.f32 0.0, %v1562
    %v1564 = vpop.f32.mrb[0].mxu0
    %v1565 = vadd.f32 0.0, %v1564
    %1566 = vdwg.mxu0
    %1567 = vmatprep.subr.mxu0 %v304
    %1568 = vmatpush1.msra.mxu0 %v303
    %1569 = vmatprep.subr.mxu0 %v308
    %1570 = vmatpush1.msra.mxu0 %v307
    %1571 = vmatprep.subr.mxu0 %v312
    %1572 = vmatpush1.msra.mxu0 %v311
    %1573 = vmatprep.subr.mxu0 %v316
    %1574 = vmatpush1.msra.mxu0 %v315
    %1575 = vmatprep.subr.mxu0 %v320
    %1576 = vmatpush1.msra.mxu0 %v319
    %1577 = vmatprep.subr.mxu0 %v324
    %1578 = vmatpush1.msra.mxu0 %v323
    %1579 = vmatprep.subr.mxu0 %v328
    %1580 = vmatpush1.msra.mxu0 %v327
    %1581 = vmatprep.subr.mxu0 %v332
    %1582 = vmatpush1.msra.mxu0 %v331
    %1583 = vmatprep.subr.mxu0 %v336
    %1584 = vmatpush1.msra.mxu0 %v335
    %1585 = vmatprep.subr.mxu0 %v340
    %1586 = vmatpush1.msra.mxu0 %v339
    %1587 = vmatprep.subr.mxu0 %v344
    %1588 = vmatpush1.msra.mxu0 %v343
    %1589 = vmatprep.subr.mxu0 %v348
    %1590 = vmatpush1.msra.mxu0 %v347
    %1591 = vmatprep.subr.mxu0 %v352
    %1592 = vmatpush1.msra.mxu0 %v351
    %1593 = vmatprep.subr.mxu0 %v356
    %1594 = vmatpush1.msra.mxu0 %v355
    %1595 = vmatprep.subr.mxu0 %v360
    %1596 = vmatpush1.msra.mxu0 %v359
    %1597 = vmatprep.subr.mxu0 %v364
    %1598 = vmatpush1.msra.mxu0 %v363
    %1599 = vmatprep.subr.mxu0 0.0
    %1600 = vmatpush1.msra.mxu0 0.0
    %1601 = vmatprep.subr.mxu0 0.0
    %1602 = vmatpush1.msra.mxu0 0.0
    %1603 = vmatprep.subr.mxu0 0.0
    %1604 = vmatpush1.msra.mxu0 0.0
    %1605 = vmatprep.subr.mxu0 0.0
    %1606 = vmatpush1.msra.mxu0 0.0
    %1607 = vmatprep.subr.mxu0 0.0
    %1608 = vmatpush1.msra.mxu0 0.0
    %1609 = vmatprep.subr.mxu0 0.0
    %1610 = vmatpush1.msra.mxu0 0.0
    %1611 = vmatprep.subr.mxu0 0.0
    %1612 = vmatpush1.msra.mxu0 0.0
    %1613 = vmatprep.subr.mxu0 0.0
    %1614 = vmatpush1.msra.mxu0 0.0
    %1615 = vmatprep.subr.mxu0 0.0
    %1616 = vmatpush1.msra.mxu0 0.0
    %1617 = vmatprep.subr.mxu0 0.0
    %1618 = vmatpush1.msra.mxu0 0.0
    %1619 = vmatprep.subr.mxu0 0.0
    %1620 = vmatpush1.msra.mxu0 0.0
    %1621 = vmatprep.subr.mxu0 0.0
    %1622 = vmatpush1.msra.mxu0 0.0
    %1623 = vmatprep.subr.mxu0 0.0
    %1624 = vmatpush1.msra.mxu0 0.0
    %1625 = vmatprep.subr.mxu0 0.0
    %1626 = vmatpush1.msra.mxu0 0.0
    %1627 = vmatprep.subr.mxu0 0.0
    %1628 = vmatpush1.msra.mxu0 0.0
    %1629 = vmatprep.subr.mxu0 0.0
    %1630 = vmatpush1.msra.mxu0 0.0
    %1631 = vmatprep.mubr.f32.mxu0 0.0
    %1632 = vmatmul.mubr.f32.gmra.mrb[0].mxu0 %v1494
    %v1633 = vpop.f32.mrb[0].mxu0
    %v1634 = vadd.f32 0.0, %v1633
    %v1635 = vpop.f32.mrb[0].mxu0
    %v1636 = vadd.f32 0.0, %v1635
    %1637 = vdwg.mxu0
    %v1642 = vrot.slane %v1563, 4
    %v1643 = vrot.slane %v1565, 4
    %v1644 = vrot.slane %v1634, 4
    %v1645 = vrot.slane %v1636, 4
    %v1650 = vadd.f32 %v1489, %v1642
    %v1651 = vadd.f32 %v1490, %v1643
    %v1652 = vadd.f32 %v1491, %v1644
    %v1653 = vadd.f32 %v1492, %v1645
    %v1654 = vxor.u32 %v1650, 2147483648
    %v1655 = vmul.f32 %v1654, 1.442695
    %v1656 = vpow.pop %v1655
    %v1657 = vadd.f32 %v1656, 1.0
    %v1658 = vrcp.pop %v1657
    %v1659 = vmul.f32 1.0, %v1658
    %v1660 = vxor.u32 %v1651, 2147483648
    %v1661 = vmul.f32 %v1660, 1.442695
    %v1662 = vpow.pop %v1661
    %v1663 = vadd.f32 %v1662, 1.0
    %v1664 = vrcp.pop %v1663
    %v1665 = vmul.f32 1.0, %v1664
    %v1666 = vtanh.pop %v1652
    %v1667 = vxor.u32 %v1653, 2147483648
    %v1668 = vmul.f32 %v1667, 1.442695
    %v1669 = vpow.pop %v1668
    %v1670 = vadd.f32 %v1669, 1.0
    %v1671 = vrcp.pop %v1670
    %v1672 = vmul.f32 1.0, %v1671
    %v1674 = vrot.slane %v1485, 6
    %v1676 = vmul.f32 %v1665, %v1674
    %v1677 = vmul.f32 %v1659, %v1666
    %v1678 = vadd.f32 %v1676, %v1677
    %v1679 = vtanh.pop %v1678
    %v1680 = vmul.f32 %v1672, %v1679
    %1681 = vst [vmem:[#allocation3 + $0x8] sm:$0x30] %v1680
    %v1682 = vld [vmem:[#allocation2 + $0x20] sm:$0xc0]
    %v1683 = vld [vmem:[#allocation2 + $0x28] sm:$0xc0]
    %v1684 = vld [vmem:[#allocation2 + $0x30] sm:$0xc0]
    %v1685 = vld [vmem:[#allocation2 + $0x38] sm:$0xc0]
    %v1687 = vrot.slane %v1680, 4
    %1689 = vmatprep.subr.mxu0 %v302
    %1690 = vmatpush1.msra.mxu0 %v301
    %1691 = vmatprep.subr.mxu0 %v306
    %1692 = vmatpush1.msra.mxu0 %v305
    %1693 = vmatprep.subr.mxu0 %v310
    %1694 = vmatpush1.msra.mxu0 %v309
    %1695 = vmatprep.subr.mxu0 %v314
    %1696 = vmatpush1.msra.mxu0 %v313
    %1697 = vmatprep.subr.mxu0 %v318
    %1698 = vmatpush1.msra.mxu0 %v317
    %1699 = vmatprep.subr.mxu0 %v322
    %1700 = vmatpush1.msra.mxu0 %v321
    %1701 = vmatprep.subr.mxu0 %v326
    %1702 = vmatpush1.msra.mxu0 %v325
    %1703 = vmatprep.subr.mxu0 %v330
    %1704 = vmatpush1.msra.mxu0 %v329
    %1705 = vmatprep.subr.mxu0 %v334
    %1706 = vmatpush1.msra.mxu0 %v333
    %1707 = vmatprep.subr.mxu0 %v338
    %1708 = vmatpush1.msra.mxu0 %v337
    %1709 = vmatprep.subr.mxu0 %v342
    %1710 = vmatpush1.msra.mxu0 %v341
    %1711 = vmatprep.subr.mxu0 %v346
    %1712 = vmatpush1.msra.mxu0 %v345
    %1713 = vmatprep.subr.mxu0 %v350
    %1714 = vmatpush1.msra.mxu0 %v349
    %1715 = vmatprep.subr.mxu0 %v354
    %1716 = vmatpush1.msra.mxu0 %v353
    %1717 = vmatprep.subr.mxu0 %v358
    %1718 = vmatpush1.msra.mxu0 %v357
    %1719 = vmatprep.subr.mxu0 %v362
    %1720 = vmatpush1.msra.mxu0 %v361
    %1721 = vmatprep.subr.mxu0 0.0
    %1722 = vmatpush1.msra.mxu0 0.0
    %1723 = vmatprep.subr.mxu0 0.0
    %1724 = vmatpush1.msra.mxu0 0.0
    %1725 = vmatprep.subr.mxu0 0.0
    %1726 = vmatpush1.msra.mxu0 0.0
    %1727 = vmatprep.subr.mxu0 0.0
    %1728 = vmatpush1.msra.mxu0 0.0
    %1729 = vmatprep.subr.mxu0 0.0
    %1730 = vmatpush1.msra.mxu0 0.0
    %1731 = vmatprep.subr.mxu0 0.0
    %1732 = vmatpush1.msra.mxu0 0.0
    %1733 = vmatprep.subr.mxu0 0.0
    %1734 = vmatpush1.msra.mxu0 0.0
    %1735 = vmatprep.subr.mxu0 0.0
    %1736 = vmatpush1.msra.mxu0 0.0
    %1737 = vmatprep.subr.mxu0 0.0
    %1738 = vmatpush1.msra.mxu0 0.0
    %1739 = vmatprep.subr.mxu0 0.0
    %1740 = vmatpush1.msra.mxu0 0.0
    %1741 = vmatprep.subr.mxu0 0.0
    %1742 = vmatpush1.msra.mxu0 0.0
    %1743 = vmatprep.subr.mxu0 0.0
    %1744 = vmatpush1.msra.mxu0 0.0
    %1745 = vmatprep.subr.mxu0 0.0
    %1746 = vmatpush1.msra.mxu0 0.0
    %1747 = vmatprep.subr.mxu0 0.0
    %1748 = vmatpush1.msra.mxu0 0.0
    %1749 = vmatprep.subr.mxu0 0.0
    %1750 = vmatpush1.msra.mxu0 0.0
    %1751 = vmatprep.subr.mxu0 0.0
    %1752 = vmatpush1.msra.mxu0 0.0
    %1753 = vmatprep.mubr.f32.mxu0 0.0
    %1754 = vmatmul.mubr.f32.gmra.mrb[0].mxu0 %v1687
    %v1755 = vpop.f32.mrb[0].mxu0
    %v1756 = vadd.f32 0.0, %v1755
    %v1757 = vpop.f32.mrb[0].mxu0
    %v1758 = vadd.f32 0.0, %v1757
    %1759 = vdwg.mxu0
    %1760 = vmatprep.subr.mxu0 %v304
    %1761 = vmatpush1.msra.mxu0 %v303
    %1762 = vmatprep.subr.mxu0 %v308
    %1763 = vmatpush1.msra.mxu0 %v307
    %1764 = vmatprep.subr.mxu0 %v312
    %1765 = vmatpush1.msra.mxu0 %v311
    %1766 = vmatprep.subr.mxu0 %v316
    %1767 = vmatpush1.msra.mxu0 %v315
    %1768 = vmatprep.subr.mxu0 %v320
    %1769 = vmatpush1.msra.mxu0 %v319
    %1770 = vmatprep.subr.mxu0 %v324
    %1771 = vmatpush1.msra.mxu0 %v323
    %1772 = vmatprep.subr.mxu0 %v328
    %1773 = vmatpush1.msra.mxu0 %v327
    %1774 = vmatprep.subr.mxu0 %v332
    %1775 = vmatpush1.msra.mxu0 %v331
    %1776 = vmatprep.subr.mxu0 %v336
    %1777 = vmatpush1.msra.mxu0 %v335
    %1778 = vmatprep.subr.mxu0 %v340
    %1779 = vmatpush1.msra.mxu0 %v339
    %1780 = vmatprep.subr.mxu0 %v344
    %1781 = vmatpush1.msra.mxu0 %v343
    %1782 = vmatprep.subr.mxu0 %v348
    %1783 = vmatpush1.msra.mxu0 %v347
    %1784 = vmatprep.subr.mxu0 %v352
    %1785 = vmatpush1.msra.mxu0 %v351
    %1786 = vmatprep.subr.mxu0 %v356
    %1787 = vmatpush1.msra.mxu0 %v355
    %1788 = vmatprep.subr.mxu0 %v360
    %1789 = vmatpush1.msra.mxu0 %v359
    %1790 = vmatprep.subr.mxu0 %v364
    %1791 = vmatpush1.msra.mxu0 %v363
    %1792 = vmatprep.subr.mxu0 0.0
    %1793 = vmatpush1.msra.mxu0 0.0
    %1794 = vmatprep.subr.mxu0 0.0
    %1795 = vmatpush1.msra.mxu0 0.0
    %1796 = vmatprep.subr.mxu0 0.0
    %1797 = vmatpush1.msra.mxu0 0.0
    %1798 = vmatprep.subr.mxu0 0.0
    %1799 = vmatpush1.msra.mxu0 0.0
    %1800 = vmatprep.subr.mxu0 0.0
    %1801 = vmatpush1.msra.mxu0 0.0
    %1802 = vmatprep.subr.mxu0 0.0
    %1803 = vmatpush1.msra.mxu0 0.0
    %1804 = vmatprep.subr.mxu0 0.0
    %1805 = vmatpush1.msra.mxu0 0.0
    %1806 = vmatprep.subr.mxu0 0.0
    %1807 = vmatpush1.msra.mxu0 0.0
    %1808 = vmatprep.subr.mxu0 0.0
    %1809 = vmatpush1.msra.mxu0 0.0
    %1810 = vmatprep.subr.mxu0 0.0
    %1811 = vmatpush1.msra.mxu0 0.0
    %1812 = vmatprep.subr.mxu0 0.0
    %1813 = vmatpush1.msra.mxu0 0.0
    %1814 = vmatprep.subr.mxu0 0.0
    %1815 = vmatpush1.msra.mxu0 0.0
    %1816 = vmatprep.subr.mxu0 0.0
    %1817 = vmatpush1.msra.mxu0 0.0
    %1818 = vmatprep.subr.mxu0 0.0
    %1819 = vmatpush1.msra.mxu0 0.0
    %1820 = vmatprep.subr.mxu0 0.0
    %1821 = vmatpush1.msra.mxu0 0.0
    %1822 = vmatprep.subr.mxu0 0.0
    %1823 = vmatpush1.msra.mxu0 0.0
    %1824 = vmatprep.mubr.f32.mxu0 0.0
    %1825 = vmatmul.mubr.f32.gmra.mrb[0].mxu0 %v1687
    %v1826 = vpop.f32.mrb[0].mxu0
    %v1827 = vadd.f32 0.0, %v1826
    %v1828 = vpop.f32.mrb[0].mxu0
    %v1829 = vadd.f32 0.0, %v1828
    %1830 = vdwg.mxu0
    %v1835 = vrot.slane %v1756, 2
    %v1836 = vrot.slane %v1758, 2
    %v1837 = vrot.slane %v1827, 2
    %v1838 = vrot.slane %v1829, 2
    %v1843 = vadd.f32 %v1682, %v1835
    %v1844 = vadd.f32 %v1683, %v1836
    %v1845 = vadd.f32 %v1684, %v1837
    %v1846 = vadd.f32 %v1685, %v1838
    %v1847 = vxor.u32 %v1843, 2147483648
    %v1848 = vmul.f32 %v1847, 1.442695
    %v1849 = vpow.pop %v1848
    %v1850 = vadd.f32 %v1849, 1.0
    %v1851 = vrcp.pop %v1850
    %v1852 = vmul.f32 1.0, %v1851
    %v1853 = vxor.u32 %v1844, 2147483648
    %v1854 = vmul.f32 %v1853, 1.442695
    %v1855 = vpow.pop %v1854
    %v1856 = vadd.f32 %v1855, 1.0
    %v1857 = vrcp.pop %v1856
    %v1858 = vmul.f32 1.0, %v1857
    %v1859 = vtanh.pop %v1845
    %v1860 = vxor.u32 %v1846, 2147483648
    %v1861 = vmul.f32 %v1860, 1.442695
    %v1862 = vpow.pop %v1861
    %v1863 = vadd.f32 %v1862, 1.0
    %v1864 = vrcp.pop %v1863
    %v1865 = vmul.f32 1.0, %v1864
    %v1867 = vrot.slane %v1678, 6
    %v1869 = vmul.f32 %v1858, %v1867
    %v1870 = vmul.f32 %v1852, %v1859
    %v1871 = vadd.f32 %v1869, %v1870
    %v1872 = vtanh.pop %v1871
    %v1873 = vmul.f32 %v1865, %v1872
    %1874 = vst [vmem:[#allocation3 + $0x8] sm:$0xc0] %v1873
    %1875 = vst [vmem:[#allocation14 - $0x6] sm:$0xc0] %v1873
    %1876 = vst [vmem:[#allocation16 - $0x6] sm:$0xc0] %v1871
    %v1877 = vld [vmem:[#allocation3] sm:$0xff]
    %v1878 = vld [vmem:[#allocation3 + $0x8] sm:$0xff]
    %v1879 = vld [vmem:[#allocation12] sm:$0xff]
    %v1880 = vld [vmem:[#allocation12 + $0x8] sm:$0xff]
    %v1881 = vld [vmem:[#allocation12 + $0x10] sm:$0xff]
    %v1882 = vld [vmem:[#allocation12 + $0x18] sm:$0xff]
    %v1883 = vld [vmem:[#allocation12 + $0x20] sm:$0xff]
    %v1884 = vld [vmem:[#allocation12 + $0x28] sm:$0xff]
    %v1885 = vld [vmem:[#allocation12 + $0x30] sm:$0xff]
    %v1886 = vld [vmem:[#allocation12 + $0x38] sm:$0xff]
    %v1887 = vld [vmem:[#allocation12 + $0x40] sm:$0xff]
    %v1888 = vld [vmem:[#allocation12 + $0x48] sm:$0xff]
    %v1889 = vld [vmem:[#allocation12 + $0x50] sm:$0xff]
    %v1890 = vld [vmem:[#allocation12 + $0x58] sm:$0xff]
    %v1891 = vld [vmem:[#allocation12 + $0x60] sm:$0xff]
    %v1892 = vld [vmem:[#allocation12 + $0x68] sm:$0xff]
    %v1893 = vld [vmem:[#allocation12 + $0x70] sm:$0xff]
    %v1894 = vld [vmem:[#allocation12 + $0x78] sm:$0xff]
    %v1895 = vld [vmem:[%s7] sm:$0x1]
    %v1897 = vlaneseq
    %v1898 = vshrl.u32 %v1897, 7
    %v1899 = vsub.s32 0, %v1898
    %v1900 = vrot.slane %v1895, %v1899
    %1902 = vmatprep.subr.mxu0 0.0
    %1903 = vmatpush1.msra.mxu0 %v1879
    %1904 = vmatprep.subr.mxu0 0.0
    %1905 = vmatpush1.msra.mxu0 %v1880
    %1906 = vmatprep.subr.mxu0 0.0
    %1907 = vmatpush1.msra.mxu0 %v1881
    %1908 = vmatprep.subr.mxu0 0.0
    %1909 = vmatpush1.msra.mxu0 %v1882
    %1910 = vmatprep.subr.mxu0 0.0
    %1911 = vmatpush1.msra.mxu0 %v1883
    %1912 = vmatprep.subr.mxu0 0.0
    %1913 = vmatpush1.msra.mxu0 %v1884
    %1914 = vmatprep.subr.mxu0 0.0
    %1915 = vmatpush1.msra.mxu0 %v1885
    %1916 = vmatprep.subr.mxu0 0.0
    %1917 = vmatpush1.msra.mxu0 %v1886
    %1918 = vmatprep.subr.mxu0 0.0
    %1919 = vmatpush1.msra.mxu0 %v1887
    %1920 = vmatprep.subr.mxu0 0.0
    %1921 = vmatpush1.msra.mxu0 %v1888
    %1922 = vmatprep.subr.mxu0 0.0
    %1923 = vmatpush1.msra.mxu0 %v1889
    %1924 = vmatprep.subr.mxu0 0.0
    %1925 = vmatpush1.msra.mxu0 %v1890
    %1926 = vmatprep.subr.mxu0 0.0
    %1927 = vmatpush1.msra.mxu0 %v1891
    %1928 = vmatprep.subr.mxu0 0.0
    %1929 = vmatpush1.msra.mxu0 %v1892
    %1930 = vmatprep.subr.mxu0 0.0
    %1931 = vmatpush1.msra.mxu0 %v1893
    %1932 = vmatprep.subr.mxu0 0.0
    %1933 = vmatpush1.msra.mxu0 %v1894
    %1934 = vmatprep.subr.mxu0 0.0
    %1935 = vmatpush1.msra.mxu0 0.0
    %1936 = vmatprep.subr.mxu0 0.0
    %1937 = vmatpush1.msra.mxu0 0.0
    %1938 = vmatprep.subr.mxu0 0.0
    %1939 = vmatpush1.msra.mxu0 0.0
    %1940 = vmatprep.subr.mxu0 0.0
    %1941 = vmatpush1.msra.mxu0 0.0
    %1942 = vmatprep.subr.mxu0 0.0
    %1943 = vmatpush1.msra.mxu0 0.0
    %1944 = vmatprep.subr.mxu0 0.0
    %1945 = vmatpush1.msra.mxu0 0.0
    %1946 = vmatprep.subr.mxu0 0.0
    %1947 = vmatpush1.msra.mxu0 0.0
    %1948 = vmatprep.subr.mxu0 0.0
    %1949 = vmatpush1.msra.mxu0 0.0
    %1950 = vmatprep.subr.mxu0 0.0
    %1951 = vmatpush1.msra.mxu0 0.0
    %1952 = vmatprep.subr.mxu0 0.0
    %1953 = vmatpush1.msra.mxu0 0.0
    %1954 = vmatprep.subr.mxu0 0.0
    %1955 = vmatpush1.msra.mxu0 0.0
    %1956 = vmatprep.subr.mxu0 0.0
    %1957 = vmatpush1.msra.mxu0 0.0
    %1958 = vmatprep.subr.mxu0 0.0
    %1959 = vmatpush1.msra.mxu0 0.0
    %1960 = vmatprep.subr.mxu0 0.0
    %1961 = vmatpush1.msra.mxu0 0.0
    %1962 = vmatprep.subr.mxu0 0.0
    %1963 = vmatpush1.msra.mxu0 0.0
    %1964 = vmatprep.subr.mxu0 0.0
    %1965 = vmatpush1.msra.mxu0 0.0
    %1966 = vmatprep.mubr.f32.mxu0 0.0
    %1967 = vmatmul.mubr.f32.gmra.mrb[0].mxu0 %v1877
    %v1968 = vpop.f32.mrb[0].mxu0
    %v1969 = vadd.f32 %v1900, %v1968
    %v1970 = vpop.f32.mrb[0].mxu0
    %1971 = vmatprep.mubr.f32.mxu0 0.0
    %1972 = vmatmul.mubr.f32.gmra.mrb[0].mxu0 %v1878
    %v1973 = vpop.f32.mrb[0].mxu0
    %v1974 = vadd.f32 %v1900, %v1973
    %v1975 = vpop.f32.mrb[0].mxu0
    %1976 = vdwg.mxu0
    %1977 = vst [vmem:[#allocation13] sm:$0xff] %v1969
    %1978 = vst [vmem:[#allocation13 + $0x8] sm:$0xff] %v1974
    // Predicated region
    $region54: #{tpu_custom_call.1} parent=1 // pred_check
      _
    $region55: #{tpu_custom_call.1} parent=1 // pred_check_branch
      %1980 = sbr.rel (0) target = $region57
    $region56: #{tpu_custom_call.1} parent=1 // pred_region
      %s1982 = ssub.s32 256, 256
      %1983 = vsyncadd [#allocation6], %s1982
      %s1984 = sshll.u32 [#allocation13], 4
      %s1985 = int_to_ptr.vmem [resolvable:$true] %s1984
      %1990 = dma.vmem_to_hbm [thread:$0]  %s1985, 256, %s8, [#allocation6], 128, 128, 8
    $region57: #{tpu_custom_call.1} parent=1 // pred_fallthru
      _
    // Predicated region
    $region58: #{tpu_custom_call.1} parent=1 // pred_check
      _
    $region59: #{tpu_custom_call.1} parent=1 // pred_check_branch
      %1992 = sbr.rel (0) target = $region61
    $region60: #{tpu_custom_call.1} parent=1 // pred_region
      %s1994 = ssub.s32 32, 32
      %1995 = vsyncadd [#allocation15], %s1994
      %s1997 = sshll.u32 [#allocation14], 4
      %s1998 = int_to_ptr.vmem [resolvable:$true] %s1997
      %2000 = dma.vmem_to_hbm [thread:$0]  %s1998, 32, %s9, [#allocation15]
    $region61: #{tpu_custom_call.1} parent=1 // pred_fallthru
      _
    // Predicated region
    $region62: #{tpu_custom_call.1} parent=1 // pred_check
      _
    $region63: #{tpu_custom_call.1} parent=1 // pred_check_branch
      %2002 = sbr.rel (0) target = $region65
    $region64: #{tpu_custom_call.1} parent=1 // pred_region
      %s2004 = ssub.s32 32, 32
      %2005 = vsyncadd [#allocation15], %s2004
      %s2007 = sshll.u32 [#allocation16], 4
      %s2008 = int_to_ptr.vmem [resolvable:$true] %s2007
      %2010 = dma.vmem_to_hbm [thread:$0]  %s2008, 32, %s10, [#allocation15]
    $region65: #{tpu_custom_call.1} parent=1 // pred_fallthru
      _
    // Predicated region
    $region66: #{tpu_custom_call.1} parent=1 // pred_check
      _
    $region67: #{tpu_custom_call.1} parent=1 // pred_check_branch
      %2012 = sbr.rel (0) target = $region69
    $region68: #{tpu_custom_call.1} parent=1 // pred_region
      %2013 = dma.done [#allocation6], 256
    $region69: #{tpu_custom_call.1} parent=1 // pred_fallthru
      _
    // Predicated region
    $region70: #{tpu_custom_call.1} parent=1 // pred_check
      _
    $region71: #{tpu_custom_call.1} parent=1 // pred_check_branch
      %2015 = sbr.rel (0) target = $region73
    $region72: #{tpu_custom_call.1} parent=1 // pred_region
      %2016 = dma.done [#allocation15], 32
    $region73: #{tpu_custom_call.1} parent=1 // pred_fallthru
      _
    // Predicated region
    $region74: #{tpu_custom_call.1} parent=1 // pred_check
      _
    $region75: #{tpu_custom_call.1} parent=1 // pred_check_branch
      %2018 = sbr.rel (0) target = $region77
    $region76: #{tpu_custom_call.1} parent=1 // pred_region
      %2019 = dma.done [#allocation15], 32
    $region77: #{tpu_custom_call.1} parent=1 // pred_fallthru
      _
    %2020 = vsyncpa [#allocation5], 1
    %2021 = vsyncpa [#allocation8], 1
    %2022 = vsyncpa [#allocation11], 1
    %2023 = vsyncpa [#allocation6], 1
    %2024 = vsyncpa [#allocation15], 1

</llo_original>
